<compile_context>
chip_gen: v7x
topology: tpu7x:2x2x1
jax: 0.10.0
libtpu: 0.0.40
codegen_flags: <defaults>
</compile_context>

<pallas_src>
import numpy as np
import jax
import jax.numpy as jnp
from jax.experimental import pallas as pl
from jax.experimental.pallas import tpu as pltpu


# ----------------------------------------------------------------------------
# Rotary tables (faithful to the reference get_rotary_matrix, incl. the (i-1)).
# ----------------------------------------------------------------------------
def get_rotary_matrix(context_window, embedding_dim):
    """Full (M, D, D) rotation matrices -- used only by the pure-JAX reference."""
    R = np.zeros((context_window, embedding_dim, embedding_dim), dtype=np.float32)
    for position in range(context_window):
        for i in range(embedding_dim // 2):
            theta = 10000.0 ** (-2.0 * (i - 1) / embedding_dim)
            m_theta = position * theta
            R[position, 2 * i, 2 * i] = np.cos(m_theta)
            R[position, 2 * i, 2 * i + 1] = -np.sin(m_theta)
            R[position, 2 * i + 1, 2 * i] = np.sin(m_theta)
            R[position, 2 * i + 1, 2 * i + 1] = np.cos(m_theta)
    return jnp.asarray(R)


def get_rope_cos_sin(context_window, embedding_dim):
    """cos/sin tables (M, D) equivalent to row-vector @ R[position].

    q_rot = q * C + swap_pairs(q) * S   with  swap_pairs: (2i <-> 2i+1)
      C[:, 2i] = C[:, 2i+1] =  cos(pos * theta_i)
      S[:, 2i] =  sin(pos * theta_i),   S[:, 2i+1] = -sin(pos * theta_i)
    theta_i keeps the reference's off-by-one: 10000^(-2(i-1)/D).
    """
    half = embedding_dim // 2
    i = np.arange(half, dtype=np.float64)
    theta = 10000.0 ** (-2.0 * (i - 1) / embedding_dim)
    pos = np.arange(context_window, dtype=np.float64)[:, None]
    ang = pos * theta[None, :]
    cos = np.cos(ang)
    sin = np.sin(ang)
    C = np.zeros((context_window, embedding_dim), np.float32)
    S = np.zeros((context_window, embedding_dim), np.float32)
    C[:, 0::2] = cos
    C[:, 1::2] = cos
    S[:, 0::2] = sin
    S[:, 1::2] = -sin
    return jnp.asarray(C), jnp.asarray(S)


# ----------------------------------------------------------------------------
# Kernel 1: fused RMSNorm #1 + RoPE masked multi-head attention + out-proj
#           + residual, one grid point per batch element.
# ----------------------------------------------------------------------------
def attn_block_kernel(x_ref, scale_ref, wqkv_ref, wo_ref, bo_ref,
                      cos_ref, sin_ref, o_ref):
    x = x_ref[0].astype(jnp.float32)                    # (M, D)
    M, D = x.shape
    H = wqkv_ref.shape[-1] // (3 * D)

    # --- RMSNorm #1: per-batch Frobenius norm over (M, D) ---
    ff_rms = jnp.sqrt(jnp.mean(x * x))
    xn = scale_ref[...] * (x * (1.0 / ff_rms))          # (M, D) fp32

    cos = cos_ref[...]                                   # (M, D)
    sin = sin_ref[...]                                   # (M, D)
    lane = jax.lax.broadcasted_iota(jnp.int32, (M, D), 1)
    is_even = (lane % 2) == 0

    def rope(v):
        # swap adjacent pairs (2i <-> 2i+1) using two non-negative-shift rolls
        nxt = pltpu.roll(v, shift=D - 1, axis=1)         # out[j] = v[j+1]
        prv = pltpu.roll(v, shift=1, axis=1)             # out[j] = v[j-1]
        swapped = jnp.where(is_even, nxt, prv)
        return v * cos + swapped * sin

    # --- fused QKV projection: one (M,D)x(D,3*H*D) bf16 matmul, f32 acc ---
    xb = xn.astype(jnp.bfloat16)
    qkv = jnp.dot(xb, wqkv_ref[...], preferred_element_type=jnp.float32)

    inv_sqrt_d = float(1.0 / np.sqrt(D))
    row = jax.lax.broadcasted_iota(jnp.int32, (M, M), 0)
    col = jax.lax.broadcasted_iota(jnp.int32, (M, M), 1)
    causal = col <= row

    heads = []
    for h in range(H):
        base = 3 * h * D
        q = qkv[:, base:base + D]
        k = qkv[:, base + D:base + 2 * D]
        v = qkv[:, base + 2 * D:base + 3 * D]

        q_rot = rope(q).astype(jnp.bfloat16)
        k_rot = rope(k).astype(jnp.bfloat16)

        s = jax.lax.dot_general(q_rot, k_rot, (((1,), (1,)), ((), ())),
                                preferred_element_type=jnp.float32)
        s = s * inv_sqrt_d
        s = jnp.where(causal, s, jnp.float32(-1e30))     # causal mask
        s = s - jnp.max(s, axis=-1, keepdims=True)
        p = jnp.exp(s)
        denom = jnp.sum(p, axis=-1, keepdims=True)       # (M, 1)

        # TODO(synk): F.scaled_dot_product_attention(dropout_p=0.1) — dropout
        # omitted (inference / eval-mode identity).
        pv = jnp.dot(p.astype(jnp.bfloat16), v.astype(jnp.bfloat16),
                     preferred_element_type=jnp.float32)  # (M, D)
        # softmax denominator folded in after p@v; reciprocal runs on the EUP.
        heads.append(pv * pl.reciprocal(denom, approx=True))

    cat = jnp.concatenate(heads, axis=-1).astype(jnp.bfloat16)   # (M, H*D)
    attn = jnp.dot(cat, wo_ref[...], preferred_element_type=jnp.float32)
    attn = attn + bo_ref[...]
    # TODO(synk): nn.Dropout(0.1) after the attention projection omitted.
    o_ref[0] = (xn + attn).astype(o_ref.dtype)           # residual vs rms(x)


def attention_block(x, scale, wqkv, wo, bo, cos, sin):
    B, M, D = x.shape
    HD = wo.shape[0]
    return pl.pallas_call(
        attn_block_kernel,
        out_shape=jax.ShapeDtypeStruct((B, M, D), jnp.float32),
        grid=(B,),
        in_specs=[
            pl.BlockSpec((1, M, D), lambda b: (b, 0, 0)),        # x per batch
            pl.BlockSpec((M, D), lambda b: (0, 0)),              # rms scale
            pl.BlockSpec((D, 3 * HD), lambda b: (0, 0)),         # fused Wqkv (bf16)
            pl.BlockSpec((HD, D), lambda b: (0, 0)),             # Wo (bf16)
            pl.BlockSpec((1, D), lambda b: (0, 0)),              # bo
            pl.BlockSpec((M, D), lambda b: (0, 0)),              # cos table
            pl.BlockSpec((M, D), lambda b: (0, 0)),              # sin table
        ],
        out_specs=pl.BlockSpec((1, M, D), lambda b: (b, 0, 0)),
        compiler_params=pltpu.CompilerParams(dimension_semantics=("parallel",)),
    )(x, scale, wqkv, wo, bo, cos, sin)


# ----------------------------------------------------------------------------
# Kernel 2: fused RMSNorm #2 + Linear + SwiGLU + residual + final vocab proj
#           (vocab padded to a multiple of 128 for lane-dense stores).
# ----------------------------------------------------------------------------
def ffn_block_kernel(beta_ref, h_ref, scale_ref, w1_ref, b1_ref,
                     wgl_ref, bgl_ref, wlast_ref, blast_ref, o_ref):
    h = h_ref[0].astype(jnp.float32)                     # (M, D)
    D = h.shape[-1]

    # --- RMSNorm #2 (same parameter, as in the PyTorch module) ---
    ff_rms = jnp.sqrt(jnp.mean(h * h))
    xn = scale_ref[...] * (h * (1.0 / ff_rms))

    # --- Sequential(Linear(d,d), SwiGLU(d)) ---
    y = jnp.dot(xn.astype(jnp.bfloat16), w1_ref[...],
                preferred_element_type=jnp.float32) + b1_ref[...]
    gl = jnp.dot(y.astype(jnp.bfloat16), wgl_ref[...],
                 preferred_element_type=jnp.float32) + bgl_ref[...]   # (M, 2D)
    g = gl[:, :D]
    l = gl[:, D:]
    beta = beta_ref[0]                                   # SMEM scalar
    swish_gate = g * jax.nn.sigmoid(beta * g)
    x2 = xn + swish_gate * l                             # residual

    # --- final projection to (padded) vocab ---
    logits = jnp.dot(x2.astype(jnp.bfloat16), wlast_ref[...],
                     preferred_element_type=jnp.float32) + blast_ref[...]
    o_ref[0] = logits.astype(o_ref.dtype)


def ffn_block(h, scale, w1, b1, wgl, bgl, beta, wlast, blast):
    B, M, D = h.shape
    Vp = wlast.shape[1]
    return pl.pallas_call(
        ffn_block_kernel,
        out_shape=jax.ShapeDtypeStruct((B, M, Vp), jnp.float32),
        grid=(B,),
        in_specs=[
            pl.BlockSpec(memory_space=pltpu.MemorySpace.SMEM),   # beta (1,)
            pl.BlockSpec((1, M, D), lambda b: (b, 0, 0)),        # h per batch
            pl.BlockSpec((M, D), lambda b: (0, 0)),              # rms scale
            pl.BlockSpec((D, D), lambda b: (0, 0)),              # W1 (bf16)
            pl.BlockSpec((1, D), lambda b: (0, 0)),              # b1
            pl.BlockSpec((D, 2 * D), lambda b: (0, 0)),          # [Wg|Wl] (bf16)
            pl.BlockSpec((1, 2 * D), lambda b: (0, 0)),          # [bg|bl]
            pl.BlockSpec((D, Vp), lambda b: (0, 0)),             # Wlast padded (bf16)
            pl.BlockSpec((1, Vp), lambda b: (0, 0)),             # blast padded
        ],
        out_specs=pl.BlockSpec((1, M, Vp), lambda b: (b, 0, 0)),
        compiler_params=pltpu.CompilerParams(dimension_semantics=("parallel",)),
    )(beta, h, scale, w1, b1, wgl, bgl, wlast, blast)


# ----------------------------------------------------------------------------
# Parameter packing (fused weights, bf16 casts, vocab padding, RoPE tables)
# ----------------------------------------------------------------------------
def prepare_kernel_params(p, M, D, H, V):
    Vp = ((V + 127) // 128) * 128
    wqkv = jnp.concatenate(
        [jnp.concatenate([p['wq'][h], p['wk'][h], p['wv'][h]], axis=1)
         for h in range(H)], axis=1)                               # (D, 3*H*D)
    wgl = jnp.concatenate([p['wg'], p['wl']], axis=1)              # (D, 2D)
    bgl = jnp.concatenate([p['bg'], p['bl']], axis=0)              # (2D,)
    wlast_p = jnp.zeros((D, Vp), jnp.float32).at[:, :V].set(p['wlast'])
    blast_p = jnp.zeros((Vp,), jnp.float32).at[:V].set(p['blast'])
    cos, sin = get_rope_cos_sin(M, D)
    return dict(
        emb=p['emb'],
        rms_scale=p['rms_scale'],
        wqkv=wqkv.astype(jnp.bfloat16),
        wo=p['wo'].astype(jnp.bfloat16),
        bo=p['bo'].reshape(1, D),
        cos=cos, sin=sin,
        w1=p['w1'].astype(jnp.bfloat16),
        b1=p['b1'].reshape(1, D),
        wgl=wgl.astype(jnp.bfloat16),
        bgl=bgl.reshape(1, 2 * D),
        beta=p['beta'].reshape(1).astype(jnp.float32),
        wlast=wlast_p.astype(jnp.bfloat16),
        blast=blast_p.reshape(1, Vp),
    )


# ----------------------------------------------------------------------------
# Full RopeModel forward: embedding gather in plain JAX, 2 fused Pallas kernels
# ----------------------------------------------------------------------------
def rope_model_forward(idx, kp, vocab_size):
    x = kp['emb'][idx]                                   # (B, M, D) fp32 gather
    h1 = attention_block(x, kp['rms_scale'], kp['wqkv'], kp['wo'], kp['bo'],
                         kp['cos'], kp['sin'])           # rms(x) + attn(rms(x))
    logits_p = ffn_block(h1, kp['rms_scale'], kp['w1'], kp['b1'], kp['wgl'],
                         kp['bgl'], kp['beta'], kp['wlast'], kp['blast'])
    return logits_p[:, :, :vocab_size]                   # drop vocab padding


# ----------------------------------------------------------------------------
# Pure-JAX fp32 reference (matrix-form RoPE) for the sanity check
# ----------------------------------------------------------------------------
def reference_forward(idx, params):
    x = params['emb'][idx]
    R = params['R']

    def rms(x):
        ff = jnp.sqrt(jnp.sum(x * x, axis=(1, 2))) * (x.shape[1] * x.shape[2]) ** (-0.5)
        return params['rms_scale'][None] * (x / ff[:, None, None])

    x = rms(x)
    m = x.shape[1]
    d = x.shape[2]
    heads = []
    for h in range(params['wq'].shape[0]):
        q = x @ params['wq'][h]
        k = x @ params['wk'][h]
        v = x @ params['wv'][h]
        q_rot = jnp.einsum('bmd,mde->bme', q, R)
        k_rot = jnp.einsum('bmd,mde->bme', k, R)
        s = jnp.einsum('bqd,bkd->bqk', q_rot, k_rot) / np.sqrt(d)
        mask = jnp.tril(jnp.ones((m, m), bool))
        s = jnp.where(mask[None], s, -1e30)
        a = jax.nn.softmax(s, axis=-1)
        heads.append(a @ v)
    cat = jnp.concatenate(heads, axis=-1)
    x = x + (cat @ params['wo'] + params['bo'])
    x = rms(x)
    y = x @ params['w1'] + params['b1']
    g = y @ params['wg'] + params['bg']
    out = (g * jax.nn.sigmoid(params['beta'][0] * g)) * (y @ params['wl'] + params['bl'])
    x = x + out
    return x @ params['wlast'] + params['blast']


# ----------------------------------------------------------------------------
if __name__ == "__main__":
    # small config consistent with the module (char-level vocab, d_model=128)
    B, M, D, H, V = 2, 16, 128, 2, 65

    key = jax.random.PRNGKey(0)
    ks = jax.random.split(key, 16)

    def uni(k, shape, fan_in):
        bound = 1.0 / np.sqrt(fan_in)
        return jax.random.uniform(k, shape, jnp.float32, -bound, bound)

    params = dict(
        emb=jax.random.normal(ks[0], (V, D), jnp.float32),        # nn.Embedding
        rms_scale=jnp.ones((M, D), jnp.float32),                  # RMSNorm scale[:M]
        wq=uni(ks[1], (H, D, D), D),                               # per-head W_q^T
        wk=uni(ks[2], (H, D, D), D),
        wv=uni(ks[3], (H, D, D), D),
        wo=uni(ks[4], (H * D, D), H * D),                          # MHA out proj
        bo=uni(ks[5], (D,), H * D),
        w1=uni(ks[6], (D, D), D), b1=uni(ks[7], (D,), D),          # Sequential Linear
        wg=uni(ks[8], (D, D), D), bg=uni(ks[9], (D,), D),          # SwiGLU gate
        wl=uni(ks[10], (D, D), D), bl=uni(ks[11], (D,), D),        # SwiGLU linear
        beta=jnp.ones((1,), jnp.float32),                          # SwiGLU beta
        wlast=uni(ks[12], (D, V), D), blast=uni(ks[13], (V,), D),  # last_linear
        R=get_rotary_matrix(M, D),                                 # reference only
    )

    idx = jax.random.randint(ks[14], (B, M), 0, V)

    kp = prepare_kernel_params(params, M, D, H, V)
    fwd = jax.jit(rope_model_forward, static_argnums=2)
    logits = jax.block_until_ready(fwd(idx, kp, V))

    assert logits.shape == (B, M, V), logits.shape
    assert bool(jnp.all(jnp.isfinite(logits)))

    with jax.default_matmul_precision("float32"):
        ref = jax.jit(reference_forward)(idx, params)
    ref = jax.block_until_ready(ref)
    err = float(jnp.max(jnp.abs(logits - ref)))
    # bf16 MXU operands (fp32 accumulation) vs the all-fp32 reference.
    assert err < 1.5e-1, f"mismatch vs reference: max abs err = {err}"

    print("KERNEL_OK")
</pallas_src>

<mosaic_0001>
module attributes {stable_mosaic.version = 11 : i64} {
  func.func @attn_block_kernel(%arg0: i32, %arg1: memref<1x16x128xf32, #tpu.memory_space<vmem>>, %arg2: memref<16x128xf32, #tpu.memory_space<vmem>>, %arg3: memref<128x768xbf16, #tpu.memory_space<vmem>>, %arg4: memref<256x128xbf16, #tpu.memory_space<vmem>>, %arg5: memref<1x128xf32, #tpu.memory_space<vmem>>, %arg6: memref<16x128xf32, #tpu.memory_space<vmem>>, %arg7: memref<16x128xf32, #tpu.memory_space<vmem>>, %arg8: memref<1x16x128xf32, #tpu.memory_space<vmem>>) attributes {dimension_semantics = [#tpu.dimension_semantics<parallel>], iteration_bounds = array<i64: 2>, scalar_prefetch = 0 : i64, scratch_operands = 0 : i64, tpu.core_type = #tpu.core_type<tc>, window_params = [{transform_indices = @transform_0, window_bounds = array<i64: 1, 16, 128>}, {pipeline_mode = #tpu.pipeline_mode<synchronous>, transform_indices = @transform_1, window_bounds = array<i64: 16, 128>}, {pipeline_mode = #tpu.pipeline_mode<synchronous>, transform_indices = @transform_2, window_bounds = array<i64: 128, 768>}, {pipeline_mode = #tpu.pipeline_mode<synchronous>, transform_indices = @transform_3, window_bounds = array<i64: 256, 128>}, {pipeline_mode = #tpu.pipeline_mode<synchronous>, transform_indices = @transform_4, window_bounds = array<i64: 1, 128>}, {pipeline_mode = #tpu.pipeline_mode<synchronous>, transform_indices = @transform_5, window_bounds = array<i64: 16, 128>}, {pipeline_mode = #tpu.pipeline_mode<synchronous>, transform_indices = @transform_6, window_bounds = array<i64: 16, 128>}, {transform_indices = @transform_7, window_bounds = array<i64: 1, 16, 128>}]} {
    %c0 = arith.constant 0 : index
    %c0_0 = arith.constant 0 : index
    %c0_1 = arith.constant 0 : index
    %0 = vector.load %arg1[%c0, %c0_0, %c0_1] : memref<1x16x128xf32, #tpu.memory_space<vmem>>, vector<1x16x128xf32>
    %1 = vector.shape_cast %0 : vector<1x16x128xf32> to vector<16x128xf32>
    %2 = arith.mulf %1, %1 : vector<16x128xf32>
    %3 = vector.shape_cast %2 : vector<16x128xf32> to vector<1x16x128xf32>
    %cst = arith.constant dense<0.000000e+00> : vector<1xf32>
    %4 = vector.multi_reduction <add>, %3, %cst [1, 2] : vector<1x16x128xf32> to vector<1xf32>
    %5 = vector.shape_cast %4 : vector<1xf32> to vector<1x1x1xf32>
    %6 = vector.extract %5[0, 0, 0] : f32 from vector<1x1x1xf32>
    %cst_2 = arith.constant 2.048000e+03 : f32
    %7 = arith.divf %6, %cst_2 : f32
    %8 = math.sqrt %7 : f32
    %c0_3 = arith.constant 0 : index
    %c0_4 = arith.constant 0 : index
    %9 = vector.load %arg2[%c0_3, %c0_4] : memref<16x128xf32, #tpu.memory_space<vmem>>, vector<16x128xf32>
    %cst_5 = arith.constant 1.000000e+00 : f32
    %10 = arith.divf %cst_5, %8 : f32
    %11 = vector.broadcast %10 : f32 to vector<16x128xf32>
    %12 = arith.mulf %1, %11 : vector<16x128xf32>
    %13 = arith.mulf %9, %12 : vector<16x128xf32>
    %c0_6 = arith.constant 0 : index
    %c0_7 = arith.constant 0 : index
    %14 = vector.load %arg6[%c0_6, %c0_7] : memref<16x128xf32, #tpu.memory_space<vmem>>, vector<16x128xf32>
    %c0_8 = arith.constant 0 : index
    %c0_9 = arith.constant 0 : index
    %15 = vector.load %arg7[%c0_8, %c0_9] : memref<16x128xf32, #tpu.memory_space<vmem>>, vector<16x128xf32>
    %16 = tpu.iota {dimensions = array<i32: 1>} : vector<16x128xi32>
    %c2_i32 = arith.constant 2 : i32
    %c0_i32 = arith.constant 0 : i32
    %17 = arith.cmpi eq, %c2_i32, %c0_i32 : i32
    %c1_i32 = arith.constant 1 : i32
    %18 = arith.select %17, %c1_i32, %c2_i32 : i32
    %19 = vector.broadcast %18 : i32 to vector<16x128xi32>
    %20 = arith.remsi %16, %19 : vector<16x128xi32>
    %c0_i32_10 = arith.constant 0 : i32
    %21 = vector.broadcast %c0_i32_10 : i32 to vector<16x128xi32>
    %22 = arith.cmpi ne, %20, %21 : vector<16x128xi32>
    %c0_i32_11 = arith.constant 0 : i32
    %23 = vector.broadcast %c0_i32_11 : i32 to vector<16x128xi32>
    %24 = arith.cmpi slt, %20, %23 : vector<16x128xi32>
    %c0_i32_12 = arith.constant 0 : i32
    %25 = arith.cmpi slt, %18, %c0_i32_12 : i32
    %26 = vector.broadcast %25 : i1 to vector<16x128xi1>
    %27 = vector.broadcast %26 : vector<16x128xi1> to vector<16x128xi1>
    %28 = arith.xori %24, %27 : vector<16x128xi1>
    %29 = arith.andi %28, %22 : vector<16x128xi1>
    %30 = vector.broadcast %18 : i32 to vector<16x128xi32>
    %31 = arith.addi %20, %30 : vector<16x128xi32>
    %32 = arith.select %29, %31, %20 : vector<16x128xi1>, vector<16x128xi32>
    %c0_i32_13 = arith.constant 0 : i32
    %33 = vector.broadcast %c0_i32_13 : i32 to vector<16x128xi32>
    %34 = arith.cmpi eq, %32, %33 : vector<16x128xi32>
    %35 = arith.truncf %13 : vector<16x128xf32> to vector<16x128xbf16>
    %c0_14 = arith.constant 0 : index
    %c0_15 = arith.constant 0 : index
    %36 = vector.load %arg3[%c0_14, %c0_15] : memref<128x768xbf16, #tpu.memory_space<vmem>>, vector<128x768xbf16>
    %cst_16 = arith.constant dense<0.000000e+00> : vector<16x768xf32>
    %37 = tpu.matmul %35, %36, %cst_16 {dimension_numbers = #tpu.dot_dimension_numbers<[1], [0], [0], [1], [0, 0, 1, 1], [], []>} : vector<16x128xbf16>, vector<128x768xbf16>, vector<16x768xf32> -> vector<16x768xf32>
    %38 = tpu.iota {dimensions = array<i32: 0>} : vector<16x16xi32>
    %39 = tpu.iota {dimensions = array<i32: 1>} : vector<16x16xi32>
    %40 = arith.cmpi sle, %39, %38 : vector<16x16xi32>
    %41 = vector.extract_strided_slice %37 {offsets = [0, 0], sizes = [16, 128], strides = [1, 1]} : vector<16x768xf32> to vector<16x128xf32>
    %42 = vector.extract_strided_slice %37 {offsets = [0, 128], sizes = [16, 128], strides = [1, 1]} : vector<16x768xf32> to vector<16x128xf32>
    %43 = vector.extract_strided_slice %37 {offsets = [0, 256], sizes = [16, 128], strides = [1, 1]} : vector<16x768xf32> to vector<16x128xf32>
    %c127_i32 = arith.constant 127 : i32
    %44 = tpu.dynamic_rotate %41 by %c127_i32 dim 1 : vector<16x128xf32>, i32 -> vector<16x128xf32>
    %c1_i32_17 = arith.constant 1 : i32
    %45 = tpu.dynamic_rotate %41 by %c1_i32_17 dim 1 : vector<16x128xf32>, i32 -> vector<16x128xf32>
    %46 = arith.select %34, %44, %45 : vector<16x128xi1>, vector<16x128xf32>
    %47 = arith.mulf %41, %14 : vector<16x128xf32>
    %48 = arith.mulf %46, %15 : vector<16x128xf32>
    %49 = arith.addf %47, %48 : vector<16x128xf32>
    %50 = arith.truncf %49 : vector<16x128xf32> to vector<16x128xbf16>
    %c127_i32_18 = arith.constant 127 : i32
    %51 = tpu.dynamic_rotate %42 by %c127_i32_18 dim 1 : vector<16x128xf32>, i32 -> vector<16x128xf32>
    %c1_i32_19 = arith.constant 1 : i32
    %52 = tpu.dynamic_rotate %42 by %c1_i32_19 dim 1 : vector<16x128xf32>, i32 -> vector<16x128xf32>
    %53 = arith.select %34, %51, %52 : vector<16x128xi1>, vector<16x128xf32>
    %54 = arith.mulf %42, %14 : vector<16x128xf32>
    %55 = arith.mulf %53, %15 : vector<16x128xf32>
    %56 = arith.addf %54, %55 : vector<16x128xf32>
    %57 = arith.truncf %56 : vector<16x128xf32> to vector<16x128xbf16>
    %cst_20 = arith.constant dense<0.000000e+00> : vector<16x16xf32>
    %58 = tpu.matmul %50, %57, %cst_20 {dimension_numbers = #tpu.dot_dimension_numbers<[1], [1], [0], [0], [0, 0, 1, 0], [], []>} : vector<16x128xbf16>, vector<16x128xbf16>, vector<16x16xf32> -> vector<16x16xf32>
    %cst_21 = arith.constant 0.0883883461 : f32
    %59 = vector.broadcast %cst_21 : f32 to vector<16x16xf32>
    %60 = arith.mulf %58, %59 : vector<16x16xf32>
    %cst_22 = arith.constant -1.000000e+30 : f32
    %61 = vector.broadcast %cst_22 : f32 to vector<16x16xf32>
    %62 = arith.select %40, %60, %61 : vector<16x16xi1>, vector<16x16xf32>
    %cst_23 = arith.constant dense<0xFF800000> : vector<16xf32>
    %63 = vector.multi_reduction <maximumf>, %62, %cst_23 [1] : vector<16x16xf32> to vector<16xf32>
    %64 = vector.shape_cast %63 : vector<16xf32> to vector<16x1xf32>
    %65 = vector.broadcast %64 : vector<16x1xf32> to vector<16x16xf32>
    %66 = arith.subf %62, %65 : vector<16x16xf32>
    %67 = math.exp %66 : vector<16x16xf32>
    %cst_24 = arith.constant dense<0.000000e+00> : vector<16xf32>
    %68 = vector.multi_reduction <add>, %67, %cst_24 [1] : vector<16x16xf32> to vector<16xf32>
    %69 = vector.shape_cast %68 : vector<16xf32> to vector<16x1xf32>
    %70 = arith.truncf %67 : vector<16x16xf32> to vector<16x16xbf16>
    %71 = arith.truncf %43 : vector<16x128xf32> to vector<16x128xbf16>
    %cst_25 = arith.constant dense<0.000000e+00> : vector<16x128xf32>
    %72 = tpu.matmul %70, %71, %cst_25 {dimension_numbers = #tpu.dot_dimension_numbers<[1], [0], [0], [1], [0, 0, 1, 1], [], []>} : vector<16x16xbf16>, vector<16x128xbf16>, vector<16x128xf32> -> vector<16x128xf32>
    %73 = tpu.reciprocal %69 {approx = true} : vector<16x1xf32> -> vector<16x1xf32>
    %74 = vector.broadcast %73 : vector<16x1xf32> to vector<16x128xf32>
    %75 = arith.mulf %72, %74 : vector<16x128xf32>
    %76 = vector.extract_strided_slice %37 {offsets = [0, 384], sizes = [16, 128], strides = [1, 1]} : vector<16x768xf32> to vector<16x128xf32>
    %77 = vector.extract_strided_slice %37 {offsets = [0, 512], sizes = [16, 128], strides = [1, 1]} : vector<16x768xf32> to vector<16x128xf32>
    %78 = vector.extract_strided_slice %37 {offsets = [0, 640], sizes = [16, 128], strides = [1, 1]} : vector<16x768xf32> to vector<16x128xf32>
    %c127_i32_26 = arith.constant 127 : i32
    %79 = tpu.dynamic_rotate %76 by %c127_i32_26 dim 1 : vector<16x128xf32>, i32 -> vector<16x128xf32>
    %c1_i32_27 = arith.constant 1 : i32
    %80 = tpu.dynamic_rotate %76 by %c1_i32_27 dim 1 : vector<16x128xf32>, i32 -> vector<16x128xf32>
    %81 = arith.select %34, %79, %80 : vector<16x128xi1>, vector<16x128xf32>
    %82 = arith.mulf %76, %14 : vector<16x128xf32>
    %83 = arith.mulf %81, %15 : vector<16x128xf32>
    %84 = arith.addf %82, %83 : vector<16x128xf32>
    %85 = arith.truncf %84 : vector<16x128xf32> to vector<16x128xbf16>
    %c127_i32_28 = arith.constant 127 : i32
    %86 = tpu.dynamic_rotate %77 by %c127_i32_28 dim 1 : vector<16x128xf32>, i32 -> vector<16x128xf32>
    %c1_i32_29 = arith.constant 1 : i32
    %87 = tpu.dynamic_rotate %77 by %c1_i32_29 dim 1 : vector<16x128xf32>, i32 -> vector<16x128xf32>
    %88 = arith.select %34, %86, %87 : vector<16x128xi1>, vector<16x128xf32>
    %89 = arith.mulf %77, %14 : vector<16x128xf32>
    %90 = arith.mulf %88, %15 : vector<16x128xf32>
    %91 = arith.addf %89, %90 : vector<16x128xf32>
    %92 = arith.truncf %91 : vector<16x128xf32> to vector<16x128xbf16>
    %cst_30 = arith.constant dense<0.000000e+00> : vector<16x16xf32>
    %93 = tpu.matmul %85, %92, %cst_30 {dimension_numbers = #tpu.dot_dimension_numbers<[1], [1], [0], [0], [0, 0, 1, 0], [], []>} : vector<16x128xbf16>, vector<16x128xbf16>, vector<16x16xf32> -> vector<16x16xf32>
    %cst_31 = arith.constant 0.0883883461 : f32
    %94 = vector.broadcast %cst_31 : f32 to vector<16x16xf32>
    %95 = arith.mulf %93, %94 : vector<16x16xf32>
    %cst_32 = arith.constant -1.000000e+30 : f32
    %96 = vector.broadcast %cst_32 : f32 to vector<16x16xf32>
    %97 = arith.select %40, %95, %96 : vector<16x16xi1>, vector<16x16xf32>
    %cst_33 = arith.constant dense<0xFF800000> : vector<16xf32>
    %98 = vector.multi_reduction <maximumf>, %97, %cst_33 [1] : vector<16x16xf32> to vector<16xf32>
    %99 = vector.shape_cast %98 : vector<16xf32> to vector<16x1xf32>
    %100 = vector.broadcast %99 : vector<16x1xf32> to vector<16x16xf32>
    %101 = arith.subf %97, %100 : vector<16x16xf32>
    %102 = math.exp %101 : vector<16x16xf32>
    %cst_34 = arith.constant dense<0.000000e+00> : vector<16xf32>
    %103 = vector.multi_reduction <add>, %102, %cst_34 [1] : vector<16x16xf32> to vector<16xf32>
    %104 = vector.shape_cast %103 : vector<16xf32> to vector<16x1xf32>
    %105 = arith.truncf %102 : vector<16x16xf32> to vector<16x16xbf16>
    %106 = arith.truncf %78 : vector<16x128xf32> to vector<16x128xbf16>
    %cst_35 = arith.constant dense<0.000000e+00> : vector<16x128xf32>
    %107 = tpu.matmul %105, %106, %cst_35 {dimension_numbers = #tpu.dot_dimension_numbers<[1], [0], [0], [1], [0, 0, 1, 1], [], []>} : vector<16x16xbf16>, vector<16x128xbf16>, vector<16x128xf32> -> vector<16x128xf32>
    %108 = tpu.reciprocal %104 {approx = true} : vector<16x1xf32> -> vector<16x1xf32>
    %109 = vector.broadcast %108 : vector<16x1xf32> to vector<16x128xf32>
    %110 = arith.mulf %107, %109 : vector<16x128xf32>
    %111 = tpu.concatenate %75, %110 in 1 : vector<16x128xf32>, vector<16x128xf32> -> vector<16x256xf32>
    %112 = arith.truncf %111 : vector<16x256xf32> to vector<16x256xbf16>
    %c0_36 = arith.constant 0 : index
    %c0_37 = arith.constant 0 : index
    %113 = vector.load %arg4[%c0_36, %c0_37] : memref<256x128xbf16, #tpu.memory_space<vmem>>, vector<256x128xbf16>
    %cst_38 = arith.constant dense<0.000000e+00> : vector<16x128xf32>
    %114 = tpu.matmul %112, %113, %cst_38 {dimension_numbers = #tpu.dot_dimension_numbers<[1], [0], [0], [1], [0, 0, 1, 1], [], []>} : vector<16x256xbf16>, vector<256x128xbf16>, vector<16x128xf32> -> vector<16x128xf32>
    %c0_39 = arith.constant 0 : index
    %c0_40 = arith.constant 0 : index
    %115 = vector.load %arg5[%c0_39, %c0_40] : memref<1x128xf32, #tpu.memory_space<vmem>>, vector<1x128xf32>
    %116 = vector.broadcast %115 : vector<1x128xf32> to vector<16x128xf32>
    %117 = arith.addf %114, %116 : vector<16x128xf32>
    %118 = arith.addf %13, %117 : vector<16x128xf32>
    %c0_41 = arith.constant 0 : index
    %c0_42 = arith.constant 0 : index
    %c0_43 = arith.constant 0 : index
    %119 = vector.load %arg8[%c0_41, %c0_42, %c0_43] : memref<1x16x128xf32, #tpu.memory_space<vmem>>, vector<1x16x128xf32>
    %120 = vector.shape_cast %119 : vector<1x16x128xf32> to vector<16x128xf32>
    %121 = vector.shape_cast %118 : vector<16x128xf32> to vector<1x16x128xf32>
    tpu.vector_store %arg8[%c0_41, %c0_42, %c0_43], %121 {strides = array<i32>} : memref<1x16x128xf32, #tpu.memory_space<vmem>>, vector<1x16x128xf32>,
    return
  }
  func.func @transform_0(%arg0: i32) -> (i32, i32, i32) {
    %c0_i32 = arith.constant 0 : i32
    %c0_i32_0 = arith.constant 0 : i32
    %c0_i32_1 = arith.constant 0 : i32
    return %arg0, %c0_i32, %c0_i32_0 : i32, i32, i32
  }
  func.func @transform_1(%arg0: i32) -> (i32, i32) {
    %c0_i32 = arith.constant 0 : i32
    %c0_i32_0 = arith.constant 0 : i32
    %c0_i32_1 = arith.constant 0 : i32
    return %c0_i32, %c0_i32_0 : i32, i32
  }
  func.func @transform_2(%arg0: i32) -> (i32, i32) {
    %c0_i32 = arith.constant 0 : i32
    %c0_i32_0 = arith.constant 0 : i32
    %c0_i32_1 = arith.constant 0 : i32
    return %c0_i32, %c0_i32_0 : i32, i32
  }
  func.func @transform_3(%arg0: i32) -> (i32, i32) {
    %c0_i32 = arith.constant 0 : i32
    %c0_i32_0 = arith.constant 0 : i32
    %c0_i32_1 = arith.constant 0 : i32
    return %c0_i32, %c0_i32_0 : i32, i32
  }
  func.func @transform_4(%arg0: i32) -> (i32, i32) {
    %c0_i32 = arith.constant 0 : i32
    %c0_i32_0 = arith.constant 0 : i32
    %c0_i32_1 = arith.constant 0 : i32
    return %c0_i32, %c0_i32_0 : i32, i32
  }
  func.func @transform_5(%arg0: i32) -> (i32, i32) {
    %c0_i32 = arith.constant 0 : i32
    %c0_i32_0 = arith.constant 0 : i32
    %c0_i32_1 = arith.constant 0 : i32
    return %c0_i32, %c0_i32_0 : i32, i32
  }
  func.func @transform_6(%arg0: i32) -> (i32, i32) {
    %c0_i32 = arith.constant 0 : i32
    %c0_i32_0 = arith.constant 0 : i32
    %c0_i32_1 = arith.constant 0 : i32
    return %c0_i32, %c0_i32_0 : i32, i32
  }
  func.func @transform_7(%arg0: i32) -> (i32, i32, i32) {
    %c0_i32 = arith.constant 0 : i32
    %c0_i32_0 = arith.constant 0 : i32
    %c0_i32_1 = arith.constant 0 : i32
    return %arg0, %c0_i32, %c0_i32_0 : i32, i32, i32
  }
}

module attributes {stable_mosaic.version = 11 : i64} {
  func.func @ffn_block_kernel(%arg0: i32, %arg1: memref<1xf32, #tpu.memory_space<smem>>, %arg2: memref<1x16x128xf32, #tpu.memory_space<vmem>>, %arg3: memref<16x128xf32, #tpu.memory_space<vmem>>, %arg4: memref<128x128xbf16, #tpu.memory_space<vmem>>, %arg5: memref<1x128xf32, #tpu.memory_space<vmem>>, %arg6: memref<128x256xbf16, #tpu.memory_space<vmem>>, %arg7: memref<1x256xf32, #tpu.memory_space<vmem>>, %arg8: memref<128x128xbf16, #tpu.memory_space<vmem>>, %arg9: memref<1x128xf32, #tpu.memory_space<vmem>>, %arg10: memref<1x16x128xf32, #tpu.memory_space<vmem>>) attributes {dimension_semantics = [#tpu.dimension_semantics<parallel>], iteration_bounds = array<i64: 2>, scalar_prefetch = 0 : i64, scratch_operands = 0 : i64, tpu.core_type = #tpu.core_type<tc>, window_params = [{transform_indices = @transform_0, window_bounds = array<i64: 1>}, {transform_indices = @transform_1, window_bounds = array<i64: 1, 16, 128>}, {pipeline_mode = #tpu.pipeline_mode<synchronous>, transform_indices = @transform_2, window_bounds = array<i64: 16, 128>}, {pipeline_mode = #tpu.pipeline_mode<synchronous>, transform_indices = @transform_3, window_bounds = array<i64: 128, 128>}, {pipeline_mode = #tpu.pipeline_mode<synchronous>, transform_indices = @transform_4, window_bounds = array<i64: 1, 128>}, {pipeline_mode = #tpu.pipeline_mode<synchronous>, transform_indices = @transform_5, window_bounds = array<i64: 128, 256>}, {pipeline_mode = #tpu.pipeline_mode<synchronous>, transform_indices = @transform_6, window_bounds = array<i64: 1, 256>}, {pipeline_mode = #tpu.pipeline_mode<synchronous>, transform_indices = @transform_7, window_bounds = array<i64: 128, 128>}, {pipeline_mode = #tpu.pipeline_mode<synchronous>, transform_indices = @transform_8, window_bounds = array<i64: 1, 128>}, {transform_indices = @transform_9, window_bounds = array<i64: 1, 16, 128>}]} {
    %c0 = arith.constant 0 : index
    %c0_0 = arith.constant 0 : index
    %c0_1 = arith.constant 0 : index
    %0 = vector.load %arg2[%c0, %c0_0, %c0_1] : memref<1x16x128xf32, #tpu.memory_space<vmem>>, vector<1x16x128xf32>
    %1 = vector.shape_cast %0 : vector<1x16x128xf32> to vector<16x128xf32>
    %2 = arith.mulf %1, %1 : vector<16x128xf32>
    %3 = vector.shape_cast %2 : vector<16x128xf32> to vector<1x16x128xf32>
    %cst = arith.constant dense<0.000000e+00> : vector<1xf32>
    %4 = vector.multi_reduction <add>, %3, %cst [1, 2] : vector<1x16x128xf32> to vector<1xf32>
    %5 = vector.shape_cast %4 : vector<1xf32> to vector<1x1x1xf32>
    %6 = vector.extract %5[0, 0, 0] : f32 from vector<1x1x1xf32>
    %cst_2 = arith.constant 2.048000e+03 : f32
    %7 = arith.divf %6, %cst_2 : f32
    %8 = math.sqrt %7 : f32
    %c0_3 = arith.constant 0 : index
    %c0_4 = arith.constant 0 : index
    %9 = vector.load %arg3[%c0_3, %c0_4] : memref<16x128xf32, #tpu.memory_space<vmem>>, vector<16x128xf32>
    %cst_5 = arith.constant 1.000000e+00 : f32
    %10 = arith.divf %cst_5, %8 : f32
    %11 = vector.broadcast %10 : f32 to vector<16x128xf32>
    %12 = arith.mulf %1, %11 : vector<16x128xf32>
    %13 = arith.mulf %9, %12 : vector<16x128xf32>
    %14 = arith.truncf %13 : vector<16x128xf32> to vector<16x128xbf16>
    %c0_6 = arith.constant 0 : index
    %c0_7 = arith.constant 0 : index
    %15 = vector.load %arg4[%c0_6, %c0_7] : memref<128x128xbf16, #tpu.memory_space<vmem>>, vector<128x128xbf16>
    %cst_8 = arith.constant dense<0.000000e+00> : vector<16x128xf32>
    %16 = tpu.matmul %14, %15, %cst_8 {dimension_numbers = #tpu.dot_dimension_numbers<[1], [0], [0], [1], [0, 0, 1, 1], [], []>} : vector<16x128xbf16>, vector<128x128xbf16>, vector<16x128xf32> -> vector<16x128xf32>
    %c0_9 = arith.constant 0 : index
    %c0_10 = arith.constant 0 : index
    %17 = vector.load %arg5[%c0_9, %c0_10] : memref<1x128xf32, #tpu.memory_space<vmem>>, vector<1x128xf32>
    %18 = vector.broadcast %17 : vector<1x128xf32> to vector<16x128xf32>
    %19 = arith.addf %16, %18 : vector<16x128xf32>
    %20 = arith.truncf %19 : vector<16x128xf32> to vector<16x128xbf16>
    %c0_11 = arith.constant 0 : index
    %c0_12 = arith.constant 0 : index
    %21 = vector.load %arg6[%c0_11, %c0_12] : memref<128x256xbf16, #tpu.memory_space<vmem>>, vector<128x256xbf16>
    %cst_13 = arith.constant dense<0.000000e+00> : vector<16x256xf32>
    %22 = tpu.matmul %20, %21, %cst_13 {dimension_numbers = #tpu.dot_dimension_numbers<[1], [0], [0], [1], [0, 0, 1, 1], [], []>} : vector<16x128xbf16>, vector<128x256xbf16>, vector<16x256xf32> -> vector<16x256xf32>
    %c0_14 = arith.constant 0 : index
    %c0_15 = arith.constant 0 : index
    %23 = vector.load %arg7[%c0_14, %c0_15] : memref<1x256xf32, #tpu.memory_space<vmem>>, vector<1x256xf32>
    %24 = vector.broadcast %23 : vector<1x256xf32> to vector<16x256xf32>
    %25 = arith.addf %22, %24 : vector<16x256xf32>
    %26 = vector.extract_strided_slice %25 {offsets = [0, 0], sizes = [16, 128], strides = [1, 1]} : vector<16x256xf32> to vector<16x128xf32>
    %27 = vector.extract_strided_slice %25 {offsets = [0, 128], sizes = [16, 128], strides = [1, 1]} : vector<16x256xf32> to vector<16x128xf32>
    %c0_16 = arith.constant 0 : index
    %28 = memref.load %arg1[%c0_16] : memref<1xf32, #tpu.memory_space<smem>>
    %29 = vector.broadcast %28 : f32 to vector<16x128xf32>
    %30 = arith.mulf %29, %26 : vector<16x128xf32>
    %31 = arith.negf %30 : vector<16x128xf32>
    %32 = math.exp %31 : vector<16x128xf32>
    %cst_17 = arith.constant 1.000000e+00 : f32
    %33 = vector.broadcast %cst_17 : f32 to vector<16x128xf32>
    %34 = arith.addf %33, %32 : vector<16x128xf32>
    %35 = arith.divf %33, %34 : vector<16x128xf32>
    %36 = arith.mulf %26, %35 : vector<16x128xf32>
    %37 = arith.mulf %36, %27 : vector<16x128xf32>
    %38 = arith.addf %13, %37 : vector<16x128xf32>
    %39 = arith.truncf %38 : vector<16x128xf32> to vector<16x128xbf16>
    %c0_18 = arith.constant 0 : index
    %c0_19 = arith.constant 0 : index
    %40 = vector.load %arg8[%c0_18, %c0_19] : memref<128x128xbf16, #tpu.memory_space<vmem>>, vector<128x128xbf16>
    %cst_20 = arith.constant dense<0.000000e+00> : vector<16x128xf32>
    %41 = tpu.matmul %39, %40, %cst_20 {dimension_numbers = #tpu.dot_dimension_numbers<[1], [0], [0], [1], [0, 0, 1, 1], [], []>} : vector<16x128xbf16>, vector<128x128xbf16>, vector<16x128xf32> -> vector<16x128xf32>
    %c0_21 = arith.constant 0 : index
    %c0_22 = arith.constant 0 : index
    %42 = vector.load %arg9[%c0_21, %c0_22] : memref<1x128xf32, #tpu.memory_space<vmem>>, vector<1x128xf32>
    %43 = vector.broadcast %42 : vector<1x128xf32> to vector<16x128xf32>
    %44 = arith.addf %41, %43 : vector<16x128xf32>
    %c0_23 = arith.constant 0 : index
    %c0_24 = arith.constant 0 : index
    %c0_25 = arith.constant 0 : index
    %45 = vector.load %arg10[%c0_23, %c0_24, %c0_25] : memref<1x16x128xf32, #tpu.memory_space<vmem>>, vector<1x16x128xf32>
    %46 = vector.shape_cast %45 : vector<1x16x128xf32> to vector<16x128xf32>
    %47 = vector.shape_cast %44 : vector<16x128xf32> to vector<1x16x128xf32>
    tpu.vector_store %arg10[%c0_23, %c0_24, %c0_25], %47 {strides = array<i32>} : memref<1x16x128xf32, #tpu.memory_space<vmem>>, vector<1x16x128xf32>,
    return
  }
  func.func @transform_0(%arg0: i32) -> i32 {
    %c0_i32 = arith.constant 0 : i32
    %c0_i32_0 = arith.constant 0 : i32
    return %c0_i32 : i32
  }
  func.func @transform_1(%arg0: i32) -> (i32, i32, i32) {
    %c0_i32 = arith.constant 0 : i32
    %c0_i32_0 = arith.constant 0 : i32
    %c0_i32_1 = arith.constant 0 : i32
    return %arg0, %c0_i32, %c0_i32_0 : i32, i32, i32
  }
  func.func @transform_2(%arg0: i32) -> (i32, i32) {
    %c0_i32 = arith.constant 0 : i32
    %c0_i32_0 = arith.constant 0 : i32
    %c0_i32_1 = arith.constant 0 : i32
    return %c0_i32, %c0_i32_0 : i32, i32
  }
  func.func @transform_3(%arg0: i32) -> (i32, i32) {
    %c0_i32 = arith.constant 0 : i32
    %c0_i32_0 = arith.constant 0 : i32
    %c0_i32_1 = arith.constant 0 : i32
    return %c0_i32, %c0_i32_0 : i32, i32
  }
  func.func @transform_4(%arg0: i32) -> (i32, i32) {
    %c0_i32 = arith.constant 0 : i32
    %c0_i32_0 = arith.constant 0 : i32
    %c0_i32_1 = arith.constant 0 : i32
    return %c0_i32, %c0_i32_0 : i32, i32
  }
  func.func @transform_5(%arg0: i32) -> (i32, i32) {
    %c0_i32 = arith.constant 0 : i32
    %c0_i32_0 = arith.constant 0 : i32
    %c0_i32_1 = arith.constant 0 : i32
    return %c0_i32, %c0_i32_0 : i32, i32
  }
  func.func @transform_6(%arg0: i32) -> (i32, i32) {
    %c0_i32 = arith.constant 0 : i32
    %c0_i32_0 = arith.constant 0 : i32
    %c0_i32_1 = arith.constant 0 : i32
    return %c0_i32, %c0_i32_0 : i32, i32
  }
  func.func @transform_7(%arg0: i32) -> (i32, i32) {
    %c0_i32 = arith.constant 0 : i32
    %c0_i32_0 = arith.constant 0 : i32
    %c0_i32_1 = arith.constant 0 : i32
    return %c0_i32, %c0_i32_0 : i32, i32
  }
  func.func @transform_8(%arg0: i32) -> (i32, i32) {
    %c0_i32 = arith.constant 0 : i32
    %c0_i32_0 = arith.constant 0 : i32
    %c0_i32_1 = arith.constant 0 : i32
    return %c0_i32, %c0_i32_0 : i32, i32
  }
  func.func @transform_9(%arg0: i32) -> (i32, i32, i32) {
    %c0_i32 = arith.constant 0 : i32
    %c0_i32_0 = arith.constant 0 : i32
    %c0_i32_1 = arith.constant 0 : i32
    return %arg0, %c0_i32, %c0_i32_0 : i32, i32, i32
  }
}

</mosaic_0001>

<llo_original>
// kernel: rope_model_forward.3
$region0: #{rope_model_forward.3}
  #allocation0 [shape = 'u32[]', space=smem, size = 0x4, offset = 0x4, fixed_abs, tag = 'smem constant byte address 0x4 - core index']
  #allocation1 [shape = 'u32[144,128]{1,0:T(1,128)}', space=vmem, size = 0x12000, scoped, tag = 'internal scratch']
  #allocation2 [shape = 'f32[1]{0:T(128)S(6)}', space=smem, size = 0x200, scoped, tag = 'scoped memory for rope_model_forward.3']
  %s0 = inlined_call_operand.<no memory space> [shape: f32[1], index: 0, kind: input, shape index: {}]
  %s1 = inlined_call_operand.vmem [shape: f32[2,16,128], index: 1, kind: input, shape index: {}]
  %s2 = inlined_call_operand.vmem [shape: f32[16,128], index: 2, kind: input, shape index: {}]
  %s3 = inlined_call_operand.vmem [shape: bf16[128,128], index: 3, kind: input, shape index: {}]
  %s4 = inlined_call_operand.vmem [shape: f32[1,128], index: 4, kind: input, shape index: {}]
  %s5 = inlined_call_operand.vmem [shape: bf16[128,256], index: 5, kind: input, shape index: {}]
  %s6 = inlined_call_operand.vmem [shape: f32[1,256], index: 6, kind: input, shape index: {}]
  %s7 = inlined_call_operand.vmem [shape: bf16[128,128], index: 7, kind: input, shape index: {}]
  %s8 = inlined_call_operand.vmem [shape: f32[1,128], index: 8, kind: input, shape index: {}]
  %s9 = inlined_call_operand.hbm [shape: f32[2,16,128], index: 9, kind: output, shape index: {}]
  %s10 = sld [smem:[#allocation0]]
  $region69: #{rope_model_forward.3} parent=0
    _
  %s12 = ssub.s32 1, %s10
  %s13 = scalar_select 0, %s12, %s10
  %14 = sst [smem:[#allocation2]] %s0
  $region1: #{rope_model_forward.3} parent=0
    #allocation3 [shape = 'u8[16384]{0}', space=vmem, size = 0x4000, scoped, tag = 'output window, operand 0']
    #allocation4 [shape = 's32[2]{0}', space=sflag, size = 0x8, scoped, tag = 'scoped memory for rope_model_forward.3']
    %15 = vsyncpa [#allocation4], 0
    %s16 = scalar_lea.sflag [#allocation4], 1
    %17 = vsyncpa %s16, 0
    loop: start=0, step=1, limit=4
    $region2: #{rope_model_forward.3} parent=1 // loop_pre_header
      _
    $region3: #{rope_model_forward.3} parent=1 // loop_header
      %s19 = sphi 0, %s23
      %p20 = scmp.ge.s32.totalorder %s19, 4
      %s27 = sphi 0, %s27
      %s29 = sphi 0, %s27
      %s30 = sphi 0, %s29
      %s44 = sphi 0, %s30
      %s50 = sphi 0, %s52
      %s53 = sphi 0, %s50
      %s54 = sphi 0, %s53
      %s70 = sphi 0, %s54
      %s74 = sphi 0, %s74
      %s76 = sphi 0, %s74
      %s77 = sphi 0, %s76
      %s91 = sphi 0, %s77
      %s95 = sphi 0, %s95
      %s97 = sphi 0, %s95
      %s98 = sphi 0, %s97
      %s112 = sphi 0, %s98
      %s116 = sphi 0, %s116
      %s118 = sphi 0, %s116
      %s119 = sphi 0, %s118
      %s133 = sphi 0, %s119
      %s137 = sphi 0, %s137
      %s139 = sphi 0, %s137
      %s140 = sphi 0, %s139
      %s154 = sphi 0, %s140
      %s158 = sphi 0, %s158
      %s160 = sphi 0, %s158
      %s161 = sphi 0, %s160
      %s175 = sphi 0, %s161
      %s179 = sphi 0, %s179
      %s181 = sphi 0, %s179
      %s182 = sphi 0, %s181
      %s196 = sphi 0, %s182
      %s200 = sphi 0, %s200
      %s202 = sphi 0, %s200
      %s203 = sphi 0, %s202
      %s217 = sphi 0, %s203
      %s223 = sphi 0, %s225
      %s226 = sphi 0, %s223
      %s227 = sphi 0, %s226
      %s243 = sphi 0, %s227
    $region4: #{rope_model_forward.3} parent=1 // loop_header_branch
      %22 = sbr.rel (%p20) target = $region8
    $region5: #{rope_model_forward.3} parent=1 // loop_body
      %s24 = ssub.s32 %s19, 1
      %s25 = ssub.s32 %s19, 2
      %s26 = sadd.s32 %s19, 1
      %s28 = sadd.s32 %s27, 1
      %p31 = scmp.eq.s32.totalorder %s19, 1
      %p32 = scmp.ne.s32.totalorder %s27, %s29
      %p33 = scmp.eq.s32.totalorder %s19, 0
      %p34 = por %p32, %p33
      %p35 = scmp.ne.s32.totalorder %s27, %s29
      %p36 = scmp.eq.s32.totalorder %s24, 1
      %p37 = por %p35, %p36
      %p38 = scmp.ne.s32.totalorder %s29, %s30
      %p39 = scmp.eq.s32.totalorder %s24, 0
      %p40 = por %p38, %p39
      %p41 = scmp.ne.s32.totalorder %s29, %s30
      %p42 = scmp.eq.s32.totalorder %s25, 1
      %p43 = por %p41, %p42
      %p45 = scmp.ne.s32.totalorder %s30, %s44
      %p46 = scmp.eq.s32.totalorder %s25, 0
      %p47 = por %p45, %p46
      %s48 = ssub.s32 %s19, %s26
      %p49 = scmp.eq.s32.totalorder %s48, 0
      %s51 = sadd.s32 %s50, 1
      %s52 = scalar_select %p49, %s50, %s51
      %p55 = pneg %p49
      %p56 = scmp.eq.s32.totalorder %s19, 1
      %p57 = por %p55, %p56
      %p58 = scmp.ne.s32.totalorder %s50, %s53
      %p59 = scmp.eq.s32.totalorder %s19, 0
      %p60 = por %p58, %p59
      %p61 = scmp.ne.s32.totalorder %s50, %s53
      %p62 = scmp.eq.s32.totalorder %s24, 1
      %p63 = por %p61, %p62
      %p64 = scmp.ne.s32.totalorder %s53, %s54
      %p65 = scmp.eq.s32.totalorder %s24, 0
      %p66 = por %p64, %p65
      %p67 = scmp.ne.s32.totalorder %s53, %s54
      %p68 = scmp.eq.s32.totalorder %s25, 1
      %p69 = por %p67, %p68
      %p71 = scmp.ne.s32.totalorder %s54, %s70
      %p72 = scmp.eq.s32.totalorder %s25, 0
      %p73 = por %p71, %p72
      %s75 = sadd.s32 %s74, 1
      %p78 = scmp.eq.s32.totalorder %s19, 1
      %p79 = scmp.ne.s32.totalorder %s74, %s76
      %p80 = scmp.eq.s32.totalorder %s19, 0
      %p81 = por %p79, %p80
      %p82 = scmp.ne.s32.totalorder %s74, %s76
      %p83 = scmp.eq.s32.totalorder %s24, 1
      %p84 = por %p82, %p83
      %p85 = scmp.ne.s32.totalorder %s76, %s77
      %p86 = scmp.eq.s32.totalorder %s24, 0
      %p87 = por %p85, %p86
      %p88 = scmp.ne.s32.totalorder %s76, %s77
      %p89 = scmp.eq.s32.totalorder %s25, 1
      %p90 = por %p88, %p89
      %p92 = scmp.ne.s32.totalorder %s77, %s91
      %p93 = scmp.eq.s32.totalorder %s25, 0
      %p94 = por %p92, %p93
      %s96 = sadd.s32 %s95, 1
      %p99 = scmp.eq.s32.totalorder %s19, 1
      %p100 = scmp.ne.s32.totalorder %s95, %s97
      %p101 = scmp.eq.s32.totalorder %s19, 0
      %p102 = por %p100, %p101
      %p103 = scmp.ne.s32.totalorder %s95, %s97
      %p104 = scmp.eq.s32.totalorder %s24, 1
      %p105 = por %p103, %p104
      %p106 = scmp.ne.s32.totalorder %s97, %s98
      %p107 = scmp.eq.s32.totalorder %s24, 0
      %p108 = por %p106, %p107
      %p109 = scmp.ne.s32.totalorder %s97, %s98
      %p110 = scmp.eq.s32.totalorder %s25, 1
      %p111 = por %p109, %p110
      %p113 = scmp.ne.s32.totalorder %s98, %s112
      %p114 = scmp.eq.s32.totalorder %s25, 0
      %p115 = por %p113, %p114
      %s117 = sadd.s32 %s116, 1
      %p120 = scmp.eq.s32.totalorder %s19, 1
      %p121 = scmp.ne.s32.totalorder %s116, %s118
      %p122 = scmp.eq.s32.totalorder %s19, 0
      %p123 = por %p121, %p122
      %p124 = scmp.ne.s32.totalorder %s116, %s118
      %p125 = scmp.eq.s32.totalorder %s24, 1
      %p126 = por %p124, %p125
      %p127 = scmp.ne.s32.totalorder %s118, %s119
      %p128 = scmp.eq.s32.totalorder %s24, 0
      %p129 = por %p127, %p128
      %p130 = scmp.ne.s32.totalorder %s118, %s119
      %p131 = scmp.eq.s32.totalorder %s25, 1
      %p132 = por %p130, %p131
      %p134 = scmp.ne.s32.totalorder %s119, %s133
      %p135 = scmp.eq.s32.totalorder %s25, 0
      %p136 = por %p134, %p135
      %s138 = sadd.s32 %s137, 1
      %p141 = scmp.eq.s32.totalorder %s19, 1
      %p142 = scmp.ne.s32.totalorder %s137, %s139
      %p143 = scmp.eq.s32.totalorder %s19, 0
      %p144 = por %p142, %p143
      %p145 = scmp.ne.s32.totalorder %s137, %s139
      %p146 = scmp.eq.s32.totalorder %s24, 1
      %p147 = por %p145, %p146
      %p148 = scmp.ne.s32.totalorder %s139, %s140
      %p149 = scmp.eq.s32.totalorder %s24, 0
      %p150 = por %p148, %p149
      %p151 = scmp.ne.s32.totalorder %s139, %s140
      %p152 = scmp.eq.s32.totalorder %s25, 1
      %p153 = por %p151, %p152
      %p155 = scmp.ne.s32.totalorder %s140, %s154
      %p156 = scmp.eq.s32.totalorder %s25, 0
      %p157 = por %p155, %p156
      %s159 = sadd.s32 %s158, 1
      %p162 = scmp.eq.s32.totalorder %s19, 1
      %p163 = scmp.ne.s32.totalorder %s158, %s160
      %p164 = scmp.eq.s32.totalorder %s19, 0
      %p165 = por %p163, %p164
      %p166 = scmp.ne.s32.totalorder %s158, %s160
      %p167 = scmp.eq.s32.totalorder %s24, 1
      %p168 = por %p166, %p167
      %p169 = scmp.ne.s32.totalorder %s160, %s161
      %p170 = scmp.eq.s32.totalorder %s24, 0
      %p171 = por %p169, %p170
      %p172 = scmp.ne.s32.totalorder %s160, %s161
      %p173 = scmp.eq.s32.totalorder %s25, 1
      %p174 = por %p172, %p173
      %p176 = scmp.ne.s32.totalorder %s161, %s175
      %p177 = scmp.eq.s32.totalorder %s25, 0
      %p178 = por %p176, %p177
      %s180 = sadd.s32 %s179, 1
      %p183 = scmp.eq.s32.totalorder %s19, 1
      %p184 = scmp.ne.s32.totalorder %s179, %s181
      %p185 = scmp.eq.s32.totalorder %s19, 0
      %p186 = por %p184, %p185
      %p187 = scmp.ne.s32.totalorder %s179, %s181
      %p188 = scmp.eq.s32.totalorder %s24, 1
      %p189 = por %p187, %p188
      %p190 = scmp.ne.s32.totalorder %s181, %s182
      %p191 = scmp.eq.s32.totalorder %s24, 0
      %p192 = por %p190, %p191
      %p193 = scmp.ne.s32.totalorder %s181, %s182
      %p194 = scmp.eq.s32.totalorder %s25, 1
      %p195 = por %p193, %p194
      %p197 = scmp.ne.s32.totalorder %s182, %s196
      %p198 = scmp.eq.s32.totalorder %s25, 0
      %p199 = por %p197, %p198
      %s201 = sadd.s32 %s200, 1
      %p204 = scmp.eq.s32.totalorder %s19, 1
      %p205 = scmp.ne.s32.totalorder %s200, %s202
      %p206 = scmp.eq.s32.totalorder %s19, 0
      %p207 = por %p205, %p206
      %p208 = scmp.ne.s32.totalorder %s200, %s202
      %p209 = scmp.eq.s32.totalorder %s24, 1
      %p210 = por %p208, %p209
      %p211 = scmp.ne.s32.totalorder %s202, %s203
      %p212 = scmp.eq.s32.totalorder %s24, 0
      %p213 = por %p211, %p212
      %p214 = scmp.ne.s32.totalorder %s202, %s203
      %p215 = scmp.eq.s32.totalorder %s25, 1
      %p216 = por %p214, %p215
      %p218 = scmp.ne.s32.totalorder %s203, %s217
      %p219 = scmp.eq.s32.totalorder %s25, 0
      %p220 = por %p218, %p219
      %s221 = ssub.s32 %s19, %s26
      %p222 = scmp.eq.s32.totalorder %s221, 0
      %s224 = sadd.s32 %s223, 1
      %s225 = scalar_select %p222, %s223, %s224
      %p228 = pneg %p222
      %p229 = scmp.eq.s32.totalorder %s19, 1
      %p230 = por %p228, %p229
      %p231 = scmp.ne.s32.totalorder %s223, %s226
      %p232 = scmp.eq.s32.totalorder %s19, 0
      %p233 = por %p231, %p232
      %p234 = scmp.ne.s32.totalorder %s223, %s226
      %p235 = scmp.eq.s32.totalorder %s24, 1
      %p236 = por %p234, %p235
      %p237 = scmp.ne.s32.totalorder %s226, %s227
      %p238 = scmp.eq.s32.totalorder %s24, 0
      %p239 = por %p237, %p238
      %p240 = scmp.ne.s32.totalorder %s226, %s227
      %p241 = scmp.eq.s32.totalorder %s25, 1
      %p242 = por %p240, %p241
      %p244 = scmp.ne.s32.totalorder %s227, %s243
      %p245 = scmp.eq.s32.totalorder %s25, 0
      %p246 = por %p244, %p245
      %p247 = scmp.le.s32.totalorder 1, %s19
      %p248 = scmp.lt.s32.totalorder %s19, 3
      %p249 = pnand %p247, %p248
      %p250 = pneg %p249
      // Predicated region
      $region9: #{rope_model_forward.3} parent=5 // pred_check
        _
      $region10: #{rope_model_forward.3} parent=5 // pred_check_branch
        %252 = sbr.rel (%p249) target = $region12
      $region11: #{rope_model_forward.3} parent=5 // pred_region
        %s253 = ssub.s32 %s19, 1
        // Predicated region
        $region13: #{rope_model_forward.3} parent=11 // pred_check
          %p254 = pneg %p40
        $region14: #{rope_model_forward.3} parent=11 // pred_check_branch
          %256 = sbr.rel (%p254) target = $region16
        $region15: #{rope_model_forward.3} parent=11 // pred_region
          _
        $region16: #{rope_model_forward.3} parent=11 // pred_fallthru
          _
        // Predicated region
        $region17: #{rope_model_forward.3} parent=11 // pred_check
          %p257 = pneg %p87
        $region18: #{rope_model_forward.3} parent=11 // pred_check_branch
          %259 = sbr.rel (%p257) target = $region20
        $region19: #{rope_model_forward.3} parent=11 // pred_region
          _
        $region20: #{rope_model_forward.3} parent=11 // pred_fallthru
          _
        // Predicated region
        $region21: #{rope_model_forward.3} parent=11 // pred_check
          %p260 = pneg %p108
        $region22: #{rope_model_forward.3} parent=11 // pred_check_branch
          %262 = sbr.rel (%p260) target = $region24
        $region23: #{rope_model_forward.3} parent=11 // pred_region
          _
        $region24: #{rope_model_forward.3} parent=11 // pred_fallthru
          _
        // Predicated region
        $region25: #{rope_model_forward.3} parent=11 // pred_check
          %p263 = pneg %p129
        $region26: #{rope_model_forward.3} parent=11 // pred_check_branch
          %265 = sbr.rel (%p263) target = $region28
        $region27: #{rope_model_forward.3} parent=11 // pred_region
          _
        $region28: #{rope_model_forward.3} parent=11 // pred_fallthru
          _
        // Predicated region
        $region29: #{rope_model_forward.3} parent=11 // pred_check
          %p266 = pneg %p150
        $region30: #{rope_model_forward.3} parent=11 // pred_check_branch
          %268 = sbr.rel (%p266) target = $region32
        $region31: #{rope_model_forward.3} parent=11 // pred_region
          _
        $region32: #{rope_model_forward.3} parent=11 // pred_fallthru
          _
        // Predicated region
        $region33: #{rope_model_forward.3} parent=11 // pred_check
          %p269 = pneg %p171
        $region34: #{rope_model_forward.3} parent=11 // pred_check_branch
          %271 = sbr.rel (%p269) target = $region36
        $region35: #{rope_model_forward.3} parent=11 // pred_region
          _
        $region36: #{rope_model_forward.3} parent=11 // pred_fallthru
          _
        // Predicated region
        $region37: #{rope_model_forward.3} parent=11 // pred_check
          %p272 = pneg %p192
        $region38: #{rope_model_forward.3} parent=11 // pred_check_branch
          %274 = sbr.rel (%p272) target = $region40
        $region39: #{rope_model_forward.3} parent=11 // pred_region
          _
        $region40: #{rope_model_forward.3} parent=11 // pred_fallthru
          _
        // Predicated region
        $region41: #{rope_model_forward.3} parent=11 // pred_check
          %p275 = pneg %p213
        $region42: #{rope_model_forward.3} parent=11 // pred_check_branch
          %277 = sbr.rel (%p275) target = $region44
        $region43: #{rope_model_forward.3} parent=11 // pred_region
          _
        $region44: #{rope_model_forward.3} parent=11 // pred_fallthru
          _
      $region12: #{rope_model_forward.3} parent=5 // pred_fallthru
        _
      %p278 = scmp.lt.s32.totalorder %s19, 2
      // Predicated region
      $region45: #{rope_model_forward.3} parent=5 // pred_check
        %p279 = pneg %p278
      $region46: #{rope_model_forward.3} parent=5 // pred_check_branch
        %281 = sbr.rel (%p279) target = $region48
      $region47: #{rope_model_forward.3} parent=5 // pred_region
        // Predicated region
        $region49: #{rope_model_forward.3} parent=47 // pred_check
          %p282 = pneg %p60
        $region50: #{rope_model_forward.3} parent=47 // pred_check_branch
          %284 = sbr.rel (%p282) target = $region52
        $region51: #{rope_model_forward.3} parent=47 // pred_region
          %p285 = scmp.lt.s32.totalorder %s19, 1
          %s286 = scalar_select %p285, %s19, 1
          %s287 = smul.addr %s286, 2
          %s288 = smul.addr %s287, 8
          %s289 = scalar_lea.vmem %s1, %s288
        $region52: #{rope_model_forward.3} parent=47 // pred_fallthru
          _
      $region48: #{rope_model_forward.3} parent=5 // pred_fallthru
        _
      %p290 = scmp.le.s32.totalorder 1, %s19
      %p291 = scmp.lt.s32.totalorder %s19, 3
      %p292 = pnand %p290, %p291
      %p293 = pneg %p292
      // Predicated region
      $region53: #{rope_model_forward.3} parent=5 // pred_check
        _
      $region54: #{rope_model_forward.3} parent=5 // pred_check_branch
        %295 = sbr.rel (%p292) target = $region56
      $region55: #{rope_model_forward.3} parent=5 // pred_region
        %s296 = ssub.s32 %s19, 1
        %p297 = pneg %p40
        %p298 = pneg %p37
        %p299 = scmp.lt.s32.totalorder %s24, 1
        %s300 = scalar_select %p299, %s24, 1
        %s301 = smul.addr %s300, 2
        %s302 = smul.addr %s301, 8
        %s303 = scalar_lea.vmem %s1, %s302
        %p304 = pneg %p66
        %p305 = pneg %p63
        %p306 = pneg %p87
        %p307 = pneg %p84
        %p308 = pneg %p108
        %p309 = pneg %p105
        %p310 = pneg %p129
        %p311 = pneg %p126
        %p312 = pneg %p150
        %p313 = pneg %p147
        %p314 = pneg %p171
        %p315 = pneg %p168
        %p316 = pneg %p192
        %p317 = pneg %p189
        %p318 = pneg %p213
        %p319 = pneg %p210
        %p320 = pneg %p239
        %p321 = pneg %p236
        %s322 = sand.u32 %s226, 1
        %s323 = scalar_lea.sflag [#allocation4], %s322
        %s324 = sand.u32 %s226, 1
        %s325 = smul.addr %s324, 16
        %s326 = scalar_lea.vmem [#allocation3], %s325
        %p327 = scmp.lt.s32.totalorder %s24, 1
        %s328 = scalar_select %p327, %s24, 1
        %s329 = smul.addr %s328, 2
        %s330 = smul.addr %s329, 8
        %s331 = scalar_lea.vmem %s1, %s330
        %v333 = vld [vmem:[%s331] sm:$0xff]
        %v334 = vld [vmem:[%s331 + $0x8] sm:$0xff]
        %v335 = vmul.f32 %v333, %v333
        %v336 = vmul.f32 %v334, %v334
        %v337 = vadd.f32 %v335, %v336
        %338 = vadd.xlane.f32.xlu0 %v337
        %v339 = vpop.xlane.xlu0 %338
        %v340 = vrot.slane %v339, 4
        %v341 = vadd.f32 %v339, %v340
        %v342 = vrot.slane %v341, 2
        %v343 = vadd.f32 %v341, %v342
        %v344 = vrot.slane %v343, 1
        %v345 = vadd.f32 %v343, %v344
        %s346 = vtos %v345
        %v347 = vrcp.pop 2048.0
        %s348 = vtos %v347
        %s349 = smul.f32 %s346, %s348
        %v350 = vstv %s349
        %v351 = vrsqrt.pop %v350
        %v352 = vmul.f32 %v350, %v351
        %vm353 = vcmp.eq.f32.partialorder %v350, inf
        %v354 = vsel %vm353, %v350, %v352
        %vm355 = vcmp.eq.f32.partialorder %v350, 0.0
        %v356 = vand.u32 %v350, 2147483648
        %v357 = vsel %vm355, %v356, %v354
        %s358 = vtos %v357
        %v359 = vld [vmem:[%s2] sm:$0xff]
        %v360 = vld [vmem:[%s2 + $0x8] sm:$0xff]
        %v361 = vstv %s358
        %v362 = vrcp.pop %v361
        %s363 = vtos %v362
        %v364 = vstv %s363
        %v365 = vmul.f32 %v333, %v364
        %v366 = vmul.f32 %v334, %v364
        %v367 = vmul.f32 %v359, %v365
        %v368 = vmul.f32 %v360, %v366
        %v369 = vpack.c.bf16 %v368, %v367
        %v370 = vld [vmem:[%s3] sm:$0xf]
        %v371 = vld [vmem:[%s3 + $0x4] sm:$0xf]
        %v372 = vld [vmem:[%s3 + $0x8] sm:$0xf]
        %v373 = vld [vmem:[%s3 + $0xc] sm:$0xf]
        %v374 = vld [vmem:[%s3 + $0x10] sm:$0xf]
        %v375 = vld [vmem:[%s3 + $0x14] sm:$0xf]
        %v376 = vld [vmem:[%s3 + $0x18] sm:$0xf]
        %v377 = vld [vmem:[%s3 + $0x1c] sm:$0xf]
        %v378 = vld [vmem:[%s3 + $0x20] sm:$0xf]
        %v379 = vld [vmem:[%s3 + $0x24] sm:$0xf]
        %v380 = vld [vmem:[%s3 + $0x28] sm:$0xf]
        %v381 = vld [vmem:[%s3 + $0x2c] sm:$0xf]
        %v382 = vld [vmem:[%s3 + $0x30] sm:$0xf]
        %v383 = vld [vmem:[%s3 + $0x34] sm:$0xf]
        %v384 = vld [vmem:[%s3 + $0x38] sm:$0xf]
        %v385 = vld [vmem:[%s3 + $0x3c] sm:$0xf]
        %v386 = vld [vmem:[%s4] sm:$0x1]
        %v388 = vlaneseq
        %v389 = vshrl.u32 %v388, 7
        %v390 = vsub.s32 0, %v389
        %v391 = vrot.slane %v386, %v390
        %v409 = vunpack.c.l.b16 %v370
        %v410 = vunpack.c.l.b16 %v371
        %v411 = vunpack.c.l.b16 %v372
        %v412 = vunpack.c.l.b16 %v373
        %v413 = vunpack.c.l.b16 %v374
        %v414 = vunpack.c.l.b16 %v375
        %v415 = vunpack.c.l.b16 %v376
        %v416 = vunpack.c.l.b16 %v377
        %v417 = vunpack.c.l.b16 %v378
        %v418 = vunpack.c.l.b16 %v379
        %v419 = vunpack.c.l.b16 %v380
        %v420 = vunpack.c.l.b16 %v381
        %v421 = vunpack.c.l.b16 %v382
        %v422 = vunpack.c.l.b16 %v383
        %v423 = vunpack.c.l.b16 %v384
        %v424 = vunpack.c.l.b16 %v385
        %v425 = vpack.c.b16 %v410, %v409
        %v426 = vpack.c.b16 %v412, %v411
        %v427 = vpack.c.b16 %v414, %v413
        %v428 = vpack.c.b16 %v416, %v415
        %v429 = vpack.c.b16 %v418, %v417
        %v430 = vpack.c.b16 %v420, %v419
        %v431 = vpack.c.b16 %v422, %v421
        %v432 = vpack.c.b16 %v424, %v423
        %441 = vmatprep.subr.bf16.mxu0 0
        %442 = vmatpush1.bf16.msra.mxu0 %v425
        %443 = vmatprep.subr.bf16.mxu0 0
        %444 = vmatpush1.bf16.msra.mxu0 %v426
        %445 = vmatprep.subr.bf16.mxu0 0
        %446 = vmatpush1.bf16.msra.mxu0 %v427
        %447 = vmatprep.subr.bf16.mxu0 0
        %448 = vmatpush1.bf16.msra.mxu0 %v428
        %449 = vmatprep.subr.bf16.mxu0 0
        %450 = vmatpush1.bf16.msra.mxu0 %v429
        %451 = vmatprep.subr.bf16.mxu0 0
        %452 = vmatpush1.bf16.msra.mxu0 %v430
        %453 = vmatprep.subr.bf16.mxu0 0
        %454 = vmatpush1.bf16.msra.mxu0 %v431
        %455 = vmatprep.subr.bf16.mxu0 0
        %456 = vmatpush1.bf16.msra.mxu0 %v432
        %457 = vmatprep.subr.bf16.mxu0 0
        %458 = vmatpush1.bf16.msra.mxu0 0
        %459 = vmatprep.subr.bf16.mxu0 0
        %460 = vmatpush1.bf16.msra.mxu0 0
        %461 = vmatprep.subr.bf16.mxu0 0
        %462 = vmatpush1.bf16.msra.mxu0 0
        %463 = vmatprep.subr.bf16.mxu0 0
        %464 = vmatpush1.bf16.msra.mxu0 0
        %465 = vmatprep.subr.bf16.mxu0 0
        %466 = vmatpush1.bf16.msra.mxu0 0
        %467 = vmatprep.subr.bf16.mxu0 0
        %468 = vmatpush1.bf16.msra.mxu0 0
        %469 = vmatprep.subr.bf16.mxu0 0
        %470 = vmatpush1.bf16.msra.mxu0 0
        %471 = vmatprep.subr.bf16.mxu0 0
        %472 = vmatpush1.bf16.msra.mxu0 0
        %473 = vmatprep.mubr.bf16.mxu0 0
        %474 = vmatmul.mubr.bf16.gmra.mrb[0].mxu0 %v369
        %v475 = vpop.f32.mrb[0].mxu0
        %v476 = vadd.f32 %v391, %v475
        %v477 = vpop.f32.mrb[0].mxu0
        %v478 = vpop.f32.mrb[0].mxu0
        %v479 = vadd.f32 %v391, %v478
        %v480 = vpop.f32.mrb[0].mxu0
        %481 = vdwg.mxu0
        %v482 = vpack.c.bf16 %v479, %v476
        %v483 = vld [vmem:[%s5] sm:$0xff]
        %v484 = vld [vmem:[%s5 + $0x8] sm:$0xff]
        %v485 = vld [vmem:[%s5 + $0x10] sm:$0xff]
        %v486 = vld [vmem:[%s5 + $0x18] sm:$0xff]
        %v487 = vld [vmem:[%s5 + $0x20] sm:$0xff]
        %v488 = vld [vmem:[%s5 + $0x28] sm:$0xff]
        %v489 = vld [vmem:[%s5 + $0x30] sm:$0xff]
        %v490 = vld [vmem:[%s5 + $0x38] sm:$0xff]
        %v491 = vld [vmem:[%s5 + $0x40] sm:$0xff]
        %v492 = vld [vmem:[%s5 + $0x48] sm:$0xff]
        %v493 = vld [vmem:[%s5 + $0x50] sm:$0xff]
        %v494 = vld [vmem:[%s5 + $0x58] sm:$0xff]
        %v495 = vld [vmem:[%s5 + $0x60] sm:$0xff]
        %v496 = vld [vmem:[%s5 + $0x68] sm:$0xff]
        %v497 = vld [vmem:[%s5 + $0x70] sm:$0xff]
        %v498 = vld [vmem:[%s5 + $0x78] sm:$0xff]
        %v499 = vld [vmem:[%s6] sm:$0x3]
        %v501 = vlaneseq
        %v502 = vshrl.u32 %v501, 7
        %v503 = vsub.s32 0, %v502
        %v504 = vrot.slane %v499, %v503
        %v505 = vlaneseq
        %v506 = vshrl.u32 %v505, 7
        %v507 = vsub.s32 1, %v506
        %v508 = vrot.slane %v499, %v507
        %v527 = vunpack.c.l.b16 %v483
        %v528 = vunpack.c.h.b16 %v483
        %v529 = vunpack.c.l.b16 %v484
        %v530 = vunpack.c.h.b16 %v484
        %v531 = vunpack.c.l.b16 %v485
        %v532 = vunpack.c.h.b16 %v485
        %v533 = vunpack.c.l.b16 %v486
        %v534 = vunpack.c.h.b16 %v486
        %v535 = vunpack.c.l.b16 %v487
        %v536 = vunpack.c.h.b16 %v487
        %v537 = vunpack.c.l.b16 %v488
        %v538 = vunpack.c.h.b16 %v488
        %v539 = vunpack.c.l.b16 %v489
        %v540 = vunpack.c.h.b16 %v489
        %v541 = vunpack.c.l.b16 %v490
        %v542 = vunpack.c.h.b16 %v490
        %v543 = vunpack.c.l.b16 %v491
        %v544 = vunpack.c.h.b16 %v491
        %v545 = vunpack.c.l.b16 %v492
        %v546 = vunpack.c.h.b16 %v492
        %v547 = vunpack.c.l.b16 %v493
        %v548 = vunpack.c.h.b16 %v493
        %v549 = vunpack.c.l.b16 %v494
        %v550 = vunpack.c.h.b16 %v494
        %v551 = vunpack.c.l.b16 %v495
        %v552 = vunpack.c.h.b16 %v495
        %v553 = vunpack.c.l.b16 %v496
        %v554 = vunpack.c.h.b16 %v496
        %v555 = vunpack.c.l.b16 %v497
        %v556 = vunpack.c.h.b16 %v497
        %v557 = vunpack.c.l.b16 %v498
        %v558 = vunpack.c.h.b16 %v498
        %v559 = vpack.c.b16 %v529, %v527
        %v560 = vpack.c.b16 %v530, %v528
        %v561 = vpack.c.b16 %v533, %v531
        %v562 = vpack.c.b16 %v534, %v532
        %v563 = vpack.c.b16 %v537, %v535
        %v564 = vpack.c.b16 %v538, %v536
        %v565 = vpack.c.b16 %v541, %v539
        %v566 = vpack.c.b16 %v542, %v540
        %v567 = vpack.c.b16 %v545, %v543
        %v568 = vpack.c.b16 %v546, %v544
        %v569 = vpack.c.b16 %v549, %v547
        %v570 = vpack.c.b16 %v550, %v548
        %v571 = vpack.c.b16 %v553, %v551
        %v572 = vpack.c.b16 %v554, %v552
        %v573 = vpack.c.b16 %v557, %v555
        %v574 = vpack.c.b16 %v558, %v556
        %591 = vmatprep.subr.bf16.mxu0 %v560
        %592 = vmatpush1.bf16.msra.mxu0 %v559
        %593 = vmatprep.subr.bf16.mxu0 %v562
        %594 = vmatpush1.bf16.msra.mxu0 %v561
        %595 = vmatprep.subr.bf16.mxu0 %v564
        %596 = vmatpush1.bf16.msra.mxu0 %v563
        %597 = vmatprep.subr.bf16.mxu0 %v566
        %598 = vmatpush1.bf16.msra.mxu0 %v565
        %599 = vmatprep.subr.bf16.mxu0 %v568
        %600 = vmatpush1.bf16.msra.mxu0 %v567
        %601 = vmatprep.subr.bf16.mxu0 %v570
        %602 = vmatpush1.bf16.msra.mxu0 %v569
        %603 = vmatprep.subr.bf16.mxu0 %v572
        %604 = vmatpush1.bf16.msra.mxu0 %v571
        %605 = vmatprep.subr.bf16.mxu0 %v574
        %606 = vmatpush1.bf16.msra.mxu0 %v573
        %607 = vmatprep.subr.bf16.mxu0 0
        %608 = vmatpush1.bf16.msra.mxu0 0
        %609 = vmatprep.subr.bf16.mxu0 0
        %610 = vmatpush1.bf16.msra.mxu0 0
        %611 = vmatprep.subr.bf16.mxu0 0
        %612 = vmatpush1.bf16.msra.mxu0 0
        %613 = vmatprep.subr.bf16.mxu0 0
        %614 = vmatpush1.bf16.msra.mxu0 0
        %615 = vmatprep.subr.bf16.mxu0 0
        %616 = vmatpush1.bf16.msra.mxu0 0
        %617 = vmatprep.subr.bf16.mxu0 0
        %618 = vmatpush1.bf16.msra.mxu0 0
        %619 = vmatprep.subr.bf16.mxu0 0
        %620 = vmatpush1.bf16.msra.mxu0 0
        %621 = vmatprep.subr.bf16.mxu0 0
        %622 = vmatpush1.bf16.msra.mxu0 0
        %623 = vmatprep.mubr.bf16.mxu0 0
        %624 = vmatmul.mubr.bf16.gmra.mrb[0].mxu0 %v482
        %v625 = vpop.f32.mrb[0].mxu0
        %v626 = vadd.f32 %v504, %v625
        %v627 = vpop.f32.mrb[0].mxu0
        %v628 = vadd.f32 %v508, %v627
        %v629 = vpop.f32.mrb[0].mxu0
        %v630 = vadd.f32 %v504, %v629
        %v631 = vpop.f32.mrb[0].mxu0
        %v632 = vadd.f32 %v508, %v631
        %633 = vdwg.mxu0
        %s634 = sld [smem:[#allocation2]]
        %v635 = vstv %s634
        %v636 = vmul.f32 %v635, %v626
        %v637 = vmul.f32 %v635, %v630
        %v638 = vxor.u32 %v636, 2147483648
        %v639 = vxor.u32 %v637, 2147483648
        %v640 = vmul.f32 %v638, 1.442695
        %v641 = vpow.pop %v640
        %v642 = vmul.f32 %v639, 1.442695
        %v643 = vpow.pop %v642
        %v644 = vadd.f32 %v641, 1.0
        %v645 = vadd.f32 %v643, 1.0
        %v646 = vrcp.pop %v644
        %v647 = vmul.f32 1.0, %v646
        %v648 = vrcp.pop %v645
        %v649 = vmul.f32 1.0, %v648
        %v650 = vmul.f32 %v626, %v647
        %v651 = vmul.f32 %v630, %v649
        %v652 = vmul.f32 %v650, %v628
        %v653 = vmul.f32 %v651, %v632
        %v654 = vadd.f32 %v367, %v652
        %v655 = vadd.f32 %v368, %v653
        %v656 = vpack.c.bf16 %v655, %v654
        %v657 = vld [vmem:[%s7] sm:$0xf]
        %v658 = vld [vmem:[%s7 + $0x4] sm:$0xf]
        %v659 = vld [vmem:[%s7 + $0x8] sm:$0xf]
        %v660 = vld [vmem:[%s7 + $0xc] sm:$0xf]
        %v661 = vld [vmem:[%s7 + $0x10] sm:$0xf]
        %v662 = vld [vmem:[%s7 + $0x14] sm:$0xf]
        %v663 = vld [vmem:[%s7 + $0x18] sm:$0xf]
        %v664 = vld [vmem:[%s7 + $0x1c] sm:$0xf]
        %v665 = vld [vmem:[%s7 + $0x20] sm:$0xf]
        %v666 = vld [vmem:[%s7 + $0x24] sm:$0xf]
        %v667 = vld [vmem:[%s7 + $0x28] sm:$0xf]
        %v668 = vld [vmem:[%s7 + $0x2c] sm:$0xf]
        %v669 = vld [vmem:[%s7 + $0x30] sm:$0xf]
        %v670 = vld [vmem:[%s7 + $0x34] sm:$0xf]
        %v671 = vld [vmem:[%s7 + $0x38] sm:$0xf]
        %v672 = vld [vmem:[%s7 + $0x3c] sm:$0xf]
        %v673 = vld [vmem:[%s8] sm:$0x1]
        %v675 = vlaneseq
        %v676 = vshrl.u32 %v675, 7
        %v677 = vsub.s32 0, %v676
        %v678 = vrot.slane %v673, %v677
        %v696 = vunpack.c.l.b16 %v657
        %v697 = vunpack.c.l.b16 %v658
        %v698 = vunpack.c.l.b16 %v659
        %v699 = vunpack.c.l.b16 %v660
        %v700 = vunpack.c.l.b16 %v661
        %v701 = vunpack.c.l.b16 %v662
        %v702 = vunpack.c.l.b16 %v663
        %v703 = vunpack.c.l.b16 %v664
        %v704 = vunpack.c.l.b16 %v665
        %v705 = vunpack.c.l.b16 %v666
        %v706 = vunpack.c.l.b16 %v667
        %v707 = vunpack.c.l.b16 %v668
        %v708 = vunpack.c.l.b16 %v669
        %v709 = vunpack.c.l.b16 %v670
        %v710 = vunpack.c.l.b16 %v671
        %v711 = vunpack.c.l.b16 %v672
        %v712 = vpack.c.b16 %v697, %v696
        %v713 = vpack.c.b16 %v699, %v698
        %v714 = vpack.c.b16 %v701, %v700
        %v715 = vpack.c.b16 %v703, %v702
        %v716 = vpack.c.b16 %v705, %v704
        %v717 = vpack.c.b16 %v707, %v706
        %v718 = vpack.c.b16 %v709, %v708
        %v719 = vpack.c.b16 %v711, %v710
        %728 = vmatprep.subr.bf16.mxu0 0
        %729 = vmatpush1.bf16.msra.mxu0 %v712
        %730 = vmatprep.subr.bf16.mxu0 0
        %731 = vmatpush1.bf16.msra.mxu0 %v713
        %732 = vmatprep.subr.bf16.mxu0 0
        %733 = vmatpush1.bf16.msra.mxu0 %v714
        %734 = vmatprep.subr.bf16.mxu0 0
        %735 = vmatpush1.bf16.msra.mxu0 %v715
        %736 = vmatprep.subr.bf16.mxu0 0
        %737 = vmatpush1.bf16.msra.mxu0 %v716
        %738 = vmatprep.subr.bf16.mxu0 0
        %739 = vmatpush1.bf16.msra.mxu0 %v717
        %740 = vmatprep.subr.bf16.mxu0 0
        %741 = vmatpush1.bf16.msra.mxu0 %v718
        %742 = vmatprep.subr.bf16.mxu0 0
        %743 = vmatpush1.bf16.msra.mxu0 %v719
        %744 = vmatprep.subr.bf16.mxu0 0
        %745 = vmatpush1.bf16.msra.mxu0 0
        %746 = vmatprep.subr.bf16.mxu0 0
        %747 = vmatpush1.bf16.msra.mxu0 0
        %748 = vmatprep.subr.bf16.mxu0 0
        %749 = vmatpush1.bf16.msra.mxu0 0
        %750 = vmatprep.subr.bf16.mxu0 0
        %751 = vmatpush1.bf16.msra.mxu0 0
        %752 = vmatprep.subr.bf16.mxu0 0
        %753 = vmatpush1.bf16.msra.mxu0 0
        %754 = vmatprep.subr.bf16.mxu0 0
        %755 = vmatpush1.bf16.msra.mxu0 0
        %756 = vmatprep.subr.bf16.mxu0 0
        %757 = vmatpush1.bf16.msra.mxu0 0
        %758 = vmatprep.subr.bf16.mxu0 0
        %759 = vmatpush1.bf16.msra.mxu0 0
        %760 = vmatprep.mubr.bf16.mxu0 0
        %761 = vmatmul.mubr.bf16.gmra.mrb[0].mxu0 %v656
        %v762 = vpop.f32.mrb[0].mxu0
        %v763 = vadd.f32 %v678, %v762
        %v764 = vpop.f32.mrb[0].mxu0
        %v765 = vpop.f32.mrb[0].mxu0
        %v766 = vadd.f32 %v678, %v765
        %v767 = vpop.f32.mrb[0].mxu0
        %768 = vdwg.mxu0
        %769 = vst [vmem:[%s326] sm:$0xff] %v763
        %770 = vst [vmem:[%s326 + $0x8] sm:$0xff] %v766
        %s771 = sand.u32 %s226, 1
        %s772 = scalar_lea.sflag [#allocation4], %s771
        %s773 = sand.u32 %s226, 1
        %s774 = smul.addr %s773, 16
        %s775 = scalar_lea.vmem [#allocation3], %s774
        // Predicated region
        $region57: #{rope_model_forward.3} parent=55 // pred_check
          %p776 = pneg %p236
        $region58: #{rope_model_forward.3} parent=55 // pred_check_branch
          %778 = sbr.rel (%p776) target = $region60
        $region59: #{rope_model_forward.3} parent=55 // pred_region
          %s780 = ssub.s32 256, 256
          %781 = vsyncadd %s772, %s780
          %s782 = smul.addr %s24, 2
          %s783 = smul.addr %s782, 128
          %s784 = scalar_lea.hbm %s9, %s783
          %s785 = sshll.u32 %s775, 4
          %s786 = int_to_ptr.vmem [resolvable:$true] %s785
          %791 = dma.vmem_to_hbm [thread:$0]  %s786, 256, %s784, %s772, 128, 128, 8
        $region60: #{rope_model_forward.3} parent=55 // pred_fallthru
          _
      $region56: #{rope_model_forward.3} parent=5 // pred_fallthru
        _
      %p792 = scmp.le.s32.totalorder 2, %s19
      // Predicated region
      $region61: #{rope_model_forward.3} parent=5 // pred_check
        %p793 = pneg %p792
      $region62: #{rope_model_forward.3} parent=5 // pred_check_branch
        %795 = sbr.rel (%p793) target = $region64
      $region63: #{rope_model_forward.3} parent=5 // pred_region
        %s796 = ssub.s32 %s19, 2
        // Predicated region
        $region65: #{rope_model_forward.3} parent=63 // pred_check
          %p797 = pneg %p242
        $region66: #{rope_model_forward.3} parent=63 // pred_check_branch
          %799 = sbr.rel (%p797) target = $region68
        $region67: #{rope_model_forward.3} parent=63 // pred_region
          %s800 = sand.u32 %s227, 1
          %s801 = scalar_lea.sflag [#allocation4], %s800
          %s802 = sand.u32 %s227, 1
          %s803 = smul.addr %s802, 16
          %s804 = scalar_lea.vmem [#allocation3], %s803
          %805 = dma.done %s801, 256
        $region68: #{rope_model_forward.3} parent=63 // pred_fallthru
          _
      $region64: #{rope_model_forward.3} parent=5 // pred_fallthru
        _
    $region6: #{rope_model_forward.3} parent=1 // loop_footer
      %s23 = sadd.s32 1, %s19
    $region7: #{rope_model_forward.3} parent=1 // loop_footer_branch
      %18 = sbr.rel target = $region3
    $region8: #{rope_model_forward.3} parent=1 // loop_exit
      _
    %806 = vsyncpa [#allocation4], 1
    %s807 = scalar_lea.sflag [#allocation4], 1
    %808 = vsyncpa %s807, 1

// kernel: rope_model_forward.2
$region0: #{rope_model_forward.2}
  #allocation0 [shape = 'u32[]', space=smem, size = 0x4, offset = 0x4, fixed_abs, tag = 'smem constant byte address 0x4 - core index']
  #allocation1 [shape = 'u32[144,128]{1,0:T(1,128)}', space=vmem, size = 0x12000, scoped, tag = 'internal scratch']
  %s0 = inlined_call_operand.vmem [shape: f32[2,16,128], index: 0, kind: input, shape index: {}]
  %s1 = inlined_call_operand.vmem [shape: f32[16,128], index: 1, kind: input, shape index: {}]
  %s2 = inlined_call_operand.hbm [shape: bf16[128,768], index: 2, kind: input, shape index: {}]
  %s3 = inlined_call_operand.vmem [shape: bf16[256,128], index: 3, kind: input, shape index: {}]
  %s4 = inlined_call_operand.vmem [shape: f32[1,128], index: 4, kind: input, shape index: {}]
  %s5 = inlined_call_operand.vmem [shape: f32[16,128], index: 5, kind: input, shape index: {}]
  %s6 = inlined_call_operand.vmem [shape: f32[16,128], index: 6, kind: input, shape index: {}]
  %s7 = inlined_call_operand.vmem [shape: f32[2,16,128], index: 7, kind: output, shape index: {}]
  %s8 = sld [smem:[#allocation0]]
  $region65: #{rope_model_forward.2} parent=0
    _
  %s10 = ssub.s32 1, %s8
  %s11 = scalar_select 0, %s10, %s8
  $region1: #{rope_model_forward.2} parent=0
    #allocation2 [shape = 'u8[196608]{0}', space=vmem, size = 0x30000, scoped, tag = 'input window, operand 2, single buffered']
    #allocation3 [shape = 's32[2]{0}', space=sflag, size = 0x8, scoped, tag = 'scoped memory for rope_model_forward.2']
    %12 = vsyncpa [#allocation3], 0
    loop: start=0, step=1, limit=4
    $region2: #{rope_model_forward.2} parent=1 // loop_pre_header
      _
    $region3: #{rope_model_forward.2} parent=1 // loop_header
      %s14 = sphi 0, %s18
      %p15 = scmp.ge.s32.totalorder %s14, 4
      %s24 = sphi 0, %s26
      %s27 = sphi 0, %s24
      %s28 = sphi 0, %s27
      %s44 = sphi 0, %s28
      %s48 = sphi 0, %s48
      %s50 = sphi 0, %s48
      %s51 = sphi 0, %s50
      %s65 = sphi 0, %s51
      %s69 = sphi 0, %s69
      %s71 = sphi 0, %s69
      %s72 = sphi 0, %s71
      %s86 = sphi 0, %s72
      %s90 = sphi 0, %s90
      %s92 = sphi 0, %s90
      %s93 = sphi 0, %s92
      %s107 = sphi 0, %s93
      %s111 = sphi 0, %s111
      %s113 = sphi 0, %s111
      %s114 = sphi 0, %s113
      %s128 = sphi 0, %s114
      %s132 = sphi 0, %s132
      %s134 = sphi 0, %s132
      %s135 = sphi 0, %s134
      %s149 = sphi 0, %s135
      %s153 = sphi 0, %s153
      %s155 = sphi 0, %s153
      %s156 = sphi 0, %s155
      %s170 = sphi 0, %s156
      %s176 = sphi 0, %s178
      %s179 = sphi 0, %s176
      %s180 = sphi 0, %s179
      %s196 = sphi 0, %s180
    $region4: #{rope_model_forward.2} parent=1 // loop_header_branch
      %17 = sbr.rel (%p15) target = $region8
    $region5: #{rope_model_forward.2} parent=1 // loop_body
      %s19 = ssub.s32 %s14, 1
      %s20 = ssub.s32 %s14, 2
      %s21 = sadd.s32 %s14, 1
      %s22 = ssub.s32 %s14, %s21
      %p23 = scmp.eq.s32.totalorder %s22, 0
      %s25 = sadd.s32 %s24, 1
      %s26 = scalar_select %p23, %s24, %s25
      %p29 = pneg %p23
      %p30 = scmp.eq.s32.totalorder %s14, 1
      %p31 = por %p29, %p30
      %p32 = scmp.ne.s32.totalorder %s24, %s27
      %p33 = scmp.eq.s32.totalorder %s14, 0
      %p34 = por %p32, %p33
      %p35 = scmp.ne.s32.totalorder %s24, %s27
      %p36 = scmp.eq.s32.totalorder %s19, 1
      %p37 = por %p35, %p36
      %p38 = scmp.ne.s32.totalorder %s27, %s28
      %p39 = scmp.eq.s32.totalorder %s19, 0
      %p40 = por %p38, %p39
      %p41 = scmp.ne.s32.totalorder %s27, %s28
      %p42 = scmp.eq.s32.totalorder %s20, 1
      %p43 = por %p41, %p42
      %p45 = scmp.ne.s32.totalorder %s28, %s44
      %p46 = scmp.eq.s32.totalorder %s20, 0
      %p47 = por %p45, %p46
      %s49 = sadd.s32 %s48, 1
      %p52 = scmp.eq.s32.totalorder %s14, 1
      %p53 = scmp.ne.s32.totalorder %s48, %s50
      %p54 = scmp.eq.s32.totalorder %s14, 0
      %p55 = por %p53, %p54
      %p56 = scmp.ne.s32.totalorder %s48, %s50
      %p57 = scmp.eq.s32.totalorder %s19, 1
      %p58 = por %p56, %p57
      %p59 = scmp.ne.s32.totalorder %s50, %s51
      %p60 = scmp.eq.s32.totalorder %s19, 0
      %p61 = por %p59, %p60
      %p62 = scmp.ne.s32.totalorder %s50, %s51
      %p63 = scmp.eq.s32.totalorder %s20, 1
      %p64 = por %p62, %p63
      %p66 = scmp.ne.s32.totalorder %s51, %s65
      %p67 = scmp.eq.s32.totalorder %s20, 0
      %p68 = por %p66, %p67
      %s70 = sadd.s32 %s69, 1
      %p73 = scmp.eq.s32.totalorder %s14, 1
      %p74 = scmp.ne.s32.totalorder %s69, %s71
      %p75 = scmp.eq.s32.totalorder %s14, 0
      %p76 = por %p74, %p75
      %p77 = scmp.ne.s32.totalorder %s69, %s71
      %p78 = scmp.eq.s32.totalorder %s19, 1
      %p79 = por %p77, %p78
      %p80 = scmp.ne.s32.totalorder %s71, %s72
      %p81 = scmp.eq.s32.totalorder %s19, 0
      %p82 = por %p80, %p81
      %p83 = scmp.ne.s32.totalorder %s71, %s72
      %p84 = scmp.eq.s32.totalorder %s20, 1
      %p85 = por %p83, %p84
      %p87 = scmp.ne.s32.totalorder %s72, %s86
      %p88 = scmp.eq.s32.totalorder %s20, 0
      %p89 = por %p87, %p88
      %s91 = sadd.s32 %s90, 1
      %p94 = scmp.eq.s32.totalorder %s14, 1
      %p95 = scmp.ne.s32.totalorder %s90, %s92
      %p96 = scmp.eq.s32.totalorder %s14, 0
      %p97 = por %p95, %p96
      %p98 = scmp.ne.s32.totalorder %s90, %s92
      %p99 = scmp.eq.s32.totalorder %s19, 1
      %p100 = por %p98, %p99
      %p101 = scmp.ne.s32.totalorder %s92, %s93
      %p102 = scmp.eq.s32.totalorder %s19, 0
      %p103 = por %p101, %p102
      %p104 = scmp.ne.s32.totalorder %s92, %s93
      %p105 = scmp.eq.s32.totalorder %s20, 1
      %p106 = por %p104, %p105
      %p108 = scmp.ne.s32.totalorder %s93, %s107
      %p109 = scmp.eq.s32.totalorder %s20, 0
      %p110 = por %p108, %p109
      %s112 = sadd.s32 %s111, 1
      %p115 = scmp.eq.s32.totalorder %s14, 1
      %p116 = scmp.ne.s32.totalorder %s111, %s113
      %p117 = scmp.eq.s32.totalorder %s14, 0
      %p118 = por %p116, %p117
      %p119 = scmp.ne.s32.totalorder %s111, %s113
      %p120 = scmp.eq.s32.totalorder %s19, 1
      %p121 = por %p119, %p120
      %p122 = scmp.ne.s32.totalorder %s113, %s114
      %p123 = scmp.eq.s32.totalorder %s19, 0
      %p124 = por %p122, %p123
      %p125 = scmp.ne.s32.totalorder %s113, %s114
      %p126 = scmp.eq.s32.totalorder %s20, 1
      %p127 = por %p125, %p126
      %p129 = scmp.ne.s32.totalorder %s114, %s128
      %p130 = scmp.eq.s32.totalorder %s20, 0
      %p131 = por %p129, %p130
      %s133 = sadd.s32 %s132, 1
      %p136 = scmp.eq.s32.totalorder %s14, 1
      %p137 = scmp.ne.s32.totalorder %s132, %s134
      %p138 = scmp.eq.s32.totalorder %s14, 0
      %p139 = por %p137, %p138
      %p140 = scmp.ne.s32.totalorder %s132, %s134
      %p141 = scmp.eq.s32.totalorder %s19, 1
      %p142 = por %p140, %p141
      %p143 = scmp.ne.s32.totalorder %s134, %s135
      %p144 = scmp.eq.s32.totalorder %s19, 0
      %p145 = por %p143, %p144
      %p146 = scmp.ne.s32.totalorder %s134, %s135
      %p147 = scmp.eq.s32.totalorder %s20, 1
      %p148 = por %p146, %p147
      %p150 = scmp.ne.s32.totalorder %s135, %s149
      %p151 = scmp.eq.s32.totalorder %s20, 0
      %p152 = por %p150, %p151
      %s154 = sadd.s32 %s153, 1
      %p157 = scmp.eq.s32.totalorder %s14, 1
      %p158 = scmp.ne.s32.totalorder %s153, %s155
      %p159 = scmp.eq.s32.totalorder %s14, 0
      %p160 = por %p158, %p159
      %p161 = scmp.ne.s32.totalorder %s153, %s155
      %p162 = scmp.eq.s32.totalorder %s19, 1
      %p163 = por %p161, %p162
      %p164 = scmp.ne.s32.totalorder %s155, %s156
      %p165 = scmp.eq.s32.totalorder %s19, 0
      %p166 = por %p164, %p165
      %p167 = scmp.ne.s32.totalorder %s155, %s156
      %p168 = scmp.eq.s32.totalorder %s20, 1
      %p169 = por %p167, %p168
      %p171 = scmp.ne.s32.totalorder %s156, %s170
      %p172 = scmp.eq.s32.totalorder %s20, 0
      %p173 = por %p171, %p172
      %s174 = ssub.s32 %s14, %s21
      %p175 = scmp.eq.s32.totalorder %s174, 0
      %s177 = sadd.s32 %s176, 1
      %s178 = scalar_select %p175, %s176, %s177
      %p181 = pneg %p175
      %p182 = scmp.eq.s32.totalorder %s14, 1
      %p183 = por %p181, %p182
      %p184 = scmp.ne.s32.totalorder %s176, %s179
      %p185 = scmp.eq.s32.totalorder %s14, 0
      %p186 = por %p184, %p185
      %p187 = scmp.ne.s32.totalorder %s176, %s179
      %p188 = scmp.eq.s32.totalorder %s19, 1
      %p189 = por %p187, %p188
      %p190 = scmp.ne.s32.totalorder %s179, %s180
      %p191 = scmp.eq.s32.totalorder %s19, 0
      %p192 = por %p190, %p191
      %p193 = scmp.ne.s32.totalorder %s179, %s180
      %p194 = scmp.eq.s32.totalorder %s20, 1
      %p195 = por %p193, %p194
      %p197 = scmp.ne.s32.totalorder %s180, %s196
      %p198 = scmp.eq.s32.totalorder %s20, 0
      %p199 = por %p197, %p198
      %p200 = scmp.le.s32.totalorder 1, %s14
      %p201 = scmp.lt.s32.totalorder %s14, 3
      %p202 = pnand %p200, %p201
      %p203 = pneg %p202
      // Predicated region
      $region9: #{rope_model_forward.2} parent=5 // pred_check
        _
      $region10: #{rope_model_forward.2} parent=5 // pred_check_branch
        %205 = sbr.rel (%p202) target = $region12
      $region11: #{rope_model_forward.2} parent=5 // pred_region
        %s206 = ssub.s32 %s14, 1
        // Predicated region
        $region13: #{rope_model_forward.2} parent=11 // pred_check
          %p207 = pneg %p61
        $region14: #{rope_model_forward.2} parent=11 // pred_check_branch
          %209 = sbr.rel (%p207) target = $region16
        $region15: #{rope_model_forward.2} parent=11 // pred_region
          _
        $region16: #{rope_model_forward.2} parent=11 // pred_fallthru
          _
        // Predicated region
        $region17: #{rope_model_forward.2} parent=11 // pred_check
          %p210 = pneg %p82
        $region18: #{rope_model_forward.2} parent=11 // pred_check_branch
          %212 = sbr.rel (%p210) target = $region20
        $region19: #{rope_model_forward.2} parent=11 // pred_region
          %s214 = ssub.s32 6144, 6144
          %215 = vsyncadd [#allocation3], %s214
          %s216 = sshll.u32 [#allocation2], 4
          %s217 = int_to_ptr.vmem [resolvable:$true] %s216
          %222 = dma.hbm_to_vmem [thread:$0]  %s2, 6144, %s217, [#allocation3], 384, 384, 24
        $region20: #{rope_model_forward.2} parent=11 // pred_fallthru
          _
        // Predicated region
        $region21: #{rope_model_forward.2} parent=11 // pred_check
          %p223 = pneg %p103
        $region22: #{rope_model_forward.2} parent=11 // pred_check_branch
          %225 = sbr.rel (%p223) target = $region24
        $region23: #{rope_model_forward.2} parent=11 // pred_region
          _
        $region24: #{rope_model_forward.2} parent=11 // pred_fallthru
          _
        // Predicated region
        $region25: #{rope_model_forward.2} parent=11 // pred_check
          %p226 = pneg %p124
        $region26: #{rope_model_forward.2} parent=11 // pred_check_branch
          %228 = sbr.rel (%p226) target = $region28
        $region27: #{rope_model_forward.2} parent=11 // pred_region
          _
        $region28: #{rope_model_forward.2} parent=11 // pred_fallthru
          _
        // Predicated region
        $region29: #{rope_model_forward.2} parent=11 // pred_check
          %p229 = pneg %p145
        $region30: #{rope_model_forward.2} parent=11 // pred_check_branch
          %231 = sbr.rel (%p229) target = $region32
        $region31: #{rope_model_forward.2} parent=11 // pred_region
          _
        $region32: #{rope_model_forward.2} parent=11 // pred_fallthru
          _
        // Predicated region
        $region33: #{rope_model_forward.2} parent=11 // pred_check
          %p232 = pneg %p166
        $region34: #{rope_model_forward.2} parent=11 // pred_check_branch
          %234 = sbr.rel (%p232) target = $region36
        $region35: #{rope_model_forward.2} parent=11 // pred_region
          _
        $region36: #{rope_model_forward.2} parent=11 // pred_fallthru
          _
      $region12: #{rope_model_forward.2} parent=5 // pred_fallthru
        _
      %p235 = scmp.lt.s32.totalorder %s14, 2
      // Predicated region
      $region37: #{rope_model_forward.2} parent=5 // pred_check
        %p236 = pneg %p235
      $region38: #{rope_model_forward.2} parent=5 // pred_check_branch
        %238 = sbr.rel (%p236) target = $region40
      $region39: #{rope_model_forward.2} parent=5 // pred_region
        // Predicated region
        $region41: #{rope_model_forward.2} parent=39 // pred_check
          %p239 = pneg %p34
        $region42: #{rope_model_forward.2} parent=39 // pred_check_branch
          %241 = sbr.rel (%p239) target = $region44
        $region43: #{rope_model_forward.2} parent=39 // pred_region
          %p242 = scmp.lt.s32.totalorder %s14, 1
          %s243 = scalar_select %p242, %s14, 1
          %s244 = smul.addr %s243, 2
          %s245 = smul.addr %s244, 8
          %s246 = scalar_lea.vmem %s0, %s245
        $region44: #{rope_model_forward.2} parent=39 // pred_fallthru
          _
      $region40: #{rope_model_forward.2} parent=5 // pred_fallthru
        _
      %p247 = scmp.le.s32.totalorder 1, %s14
      %p248 = scmp.lt.s32.totalorder %s14, 3
      %p249 = pnand %p247, %p248
      %p250 = pneg %p249
      // Predicated region
      $region45: #{rope_model_forward.2} parent=5 // pred_check
        _
      $region46: #{rope_model_forward.2} parent=5 // pred_check_branch
        %252 = sbr.rel (%p249) target = $region48
      $region47: #{rope_model_forward.2} parent=5 // pred_region
        %s253 = ssub.s32 %s14, 1
        // Predicated region
        $region49: #{rope_model_forward.2} parent=47 // pred_check
          %p254 = pneg %p82
        $region50: #{rope_model_forward.2} parent=47 // pred_check_branch
          %256 = sbr.rel (%p254) target = $region52
        $region51: #{rope_model_forward.2} parent=47 // pred_region
          %257 = dma.done [#allocation3], 6144
        $region52: #{rope_model_forward.2} parent=47 // pred_fallthru
          _
        %p258 = scmp.lt.s32.totalorder %s19, 1
        %s259 = scalar_select %p258, %s19, 1
        %s260 = smul.addr %s259, 2
        %s261 = smul.addr %s260, 8
        %s262 = scalar_lea.vmem %s0, %s261
        %p263 = pneg %p40
        %p264 = pneg %p37
        %p265 = pneg %p61
        %p266 = pneg %p58
        %p267 = pneg %p82
        %p268 = pneg %p79
        %p269 = pneg %p103
        %p270 = pneg %p100
        %p271 = pneg %p124
        %p272 = pneg %p121
        %p273 = pneg %p145
        %p274 = pneg %p142
        %p275 = pneg %p166
        %p276 = pneg %p163
        %p277 = pneg %p192
        %p278 = pneg %p189
        %p279 = scmp.lt.s32.totalorder %s19, 1
        %s280 = scalar_select %p279, %s19, 1
        %s281 = smul.addr %s280, 2
        %s282 = smul.addr %s281, 8
        %s283 = scalar_lea.vmem %s7, %s282
        %p284 = scmp.lt.s32.totalorder %s19, 1
        %s285 = scalar_select %p284, %s19, 1
        %s286 = smul.addr %s285, 2
        %s287 = smul.addr %s286, 8
        %s288 = scalar_lea.vmem %s0, %s287
        %p289 = scmp.lt.s32.totalorder %s19, 1
        %s290 = scalar_select %p289, %s19, 1
        %s291 = smul.addr %s290, 2
        %s292 = smul.addr %s291, 8
        %s293 = scalar_lea.vmem %s7, %s292
        %v295 = vld [vmem:[%s288] sm:$0xff]
        %v296 = vld [vmem:[%s288 + $0x8] sm:$0xff]
        %v297 = vmul.f32 %v295, %v295
        %v298 = vmul.f32 %v296, %v296
        %v299 = vadd.f32 %v297, %v298
        %300 = vadd.xlane.f32.xlu0 %v299
        %v301 = vpop.xlane.xlu0 %300
        %v302 = vrot.slane %v301, 4
        %v303 = vadd.f32 %v301, %v302
        %v304 = vrot.slane %v303, 2
        %v305 = vadd.f32 %v303, %v304
        %v306 = vrot.slane %v305, 1
        %v307 = vadd.f32 %v305, %v306
        %s308 = vtos %v307
        %v309 = vrcp.pop 2048.0
        %s310 = vtos %v309
        %s311 = smul.f32 %s308, %s310
        %v312 = vstv %s311
        %v313 = vrsqrt.pop %v312
        %v314 = vmul.f32 %v312, %v313
        %vm315 = vcmp.eq.f32.partialorder %v312, inf
        %v316 = vsel %vm315, %v312, %v314
        %vm317 = vcmp.eq.f32.partialorder %v312, 0.0
        %v318 = vand.u32 %v312, 2147483648
        %v319 = vsel %vm317, %v318, %v316
        %s320 = vtos %v319
        %v321 = vld [vmem:[%s1] sm:$0xff]
        %v322 = vld [vmem:[%s1 + $0x8] sm:$0xff]
        %v323 = vstv %s320
        %v324 = vrcp.pop %v323
        %s325 = vtos %v324
        %v326 = vstv %s325
        %v327 = vmul.f32 %v295, %v326
        %v328 = vmul.f32 %v296, %v326
        %v329 = vmul.f32 %v321, %v327
        %v330 = vmul.f32 %v322, %v328
        %v331 = vld [vmem:[%s5] sm:$0xff]
        %v332 = vld [vmem:[%s5 + $0x8] sm:$0xff]
        %v333 = vld [vmem:[%s6] sm:$0xff]
        %v334 = vld [vmem:[%s6 + $0x8] sm:$0xff]
        %v335 = vlaneseq
        %v336 = vand.u32 %v335, 127
        %vm337 = vcmp.lt.s32.totalorder %v336, 0
        %v338 = vsub.s32 0, %v336
        %v339 = vsel %vm337, %v338, %v336
        %v340 = vshrl.u32 %v339, 1
        %v341 = vand.u32 %v339, 1
        %v342 = vsub.s32 0, %v341
        %v343 = vsel %vm337, %v342, %v341
        %vm344 = vcmp.ne.s32.totalorder %v343, 0
        %vm345 = vcmp.lt.s32.totalorder %v343, 0
        %vm346 = vmand %vm345, %vm344
        %v347 = vadd.s32 %v343, 2
        %v348 = vsel %vm346, %v347, %v343
        %vm349 = vcmp.eq.s32.totalorder %v348, 0
        %v350 = vpack.c.bf16 %v330, %v329
        %v351 = vld [vmem:[#allocation2] sm:$0xff]
        %v352 = vld [vmem:[#allocation2 + $0x8] sm:$0xff]
        %v353 = vld [vmem:[#allocation2 + $0x10] sm:$0xff]
        %v354 = vld [vmem:[#allocation2 + $0x18] sm:$0xff]
        %v355 = vld [vmem:[#allocation2 + $0x20] sm:$0xff]
        %v356 = vld [vmem:[#allocation2 + $0x28] sm:$0xff]
        %v357 = vld [vmem:[#allocation2 + $0x30] sm:$0xff]
        %v358 = vld [vmem:[#allocation2 + $0x38] sm:$0xff]
        %v359 = vld [vmem:[#allocation2 + $0x40] sm:$0xff]
        %v360 = vld [vmem:[#allocation2 + $0x48] sm:$0xff]
        %v361 = vld [vmem:[#allocation2 + $0x50] sm:$0xff]
        %v362 = vld [vmem:[#allocation2 + $0x58] sm:$0xff]
        %v363 = vld [vmem:[#allocation2 + $0x60] sm:$0xff]
        %v364 = vld [vmem:[#allocation2 + $0x68] sm:$0xff]
        %v365 = vld [vmem:[#allocation2 + $0x70] sm:$0xff]
        %v366 = vld [vmem:[#allocation2 + $0x78] sm:$0xff]
        %v367 = vld [vmem:[#allocation2 + $0x80] sm:$0xff]
        %v368 = vld [vmem:[#allocation2 + $0x88] sm:$0xff]
        %v369 = vld [vmem:[#allocation2 + $0x90] sm:$0xff]
        %v370 = vld [vmem:[#allocation2 + $0x98] sm:$0xff]
        %v371 = vld [vmem:[#allocation2 + $0xa0] sm:$0xff]
        %v372 = vld [vmem:[#allocation2 + $0xa8] sm:$0xff]
        %v373 = vld [vmem:[#allocation2 + $0xb0] sm:$0xff]
        %v374 = vld [vmem:[#allocation2 + $0xb8] sm:$0xff]
        %v375 = vld [vmem:[#allocation2 + $0xc0] sm:$0xff]
        %v376 = vld [vmem:[#allocation2 + $0xc8] sm:$0xff]
        %v377 = vld [vmem:[#allocation2 + $0xd0] sm:$0xff]
        %v378 = vld [vmem:[#allocation2 + $0xd8] sm:$0xff]
        %v379 = vld [vmem:[#allocation2 + $0xe0] sm:$0xff]
        %v380 = vld [vmem:[#allocation2 + $0xe8] sm:$0xff]
        %v381 = vld [vmem:[#allocation2 + $0xf0] sm:$0xff]
        %v382 = vld [vmem:[#allocation2 + $0xf8] sm:$0xff]
        %v383 = vld [vmem:[#allocation2 + $0x100] sm:$0xff]
        %v384 = vld [vmem:[#allocation2 + $0x108] sm:$0xff]
        %v385 = vld [vmem:[#allocation2 + $0x110] sm:$0xff]
        %v386 = vld [vmem:[#allocation2 + $0x118] sm:$0xff]
        %v387 = vld [vmem:[#allocation2 + $0x120] sm:$0xff]
        %v388 = vld [vmem:[#allocation2 + $0x128] sm:$0xff]
        %v389 = vld [vmem:[#allocation2 + $0x130] sm:$0xff]
        %v390 = vld [vmem:[#allocation2 + $0x138] sm:$0xff]
        %v391 = vld [vmem:[#allocation2 + $0x140] sm:$0xff]
        %v392 = vld [vmem:[#allocation2 + $0x148] sm:$0xff]
        %v393 = vld [vmem:[#allocation2 + $0x150] sm:$0xff]
        %v394 = vld [vmem:[#allocation2 + $0x158] sm:$0xff]
        %v395 = vld [vmem:[#allocation2 + $0x160] sm:$0xff]
        %v396 = vld [vmem:[#allocation2 + $0x168] sm:$0xff]
        %v397 = vld [vmem:[#allocation2 + $0x170] sm:$0xff]
        %v398 = vld [vmem:[#allocation2 + $0x178] sm:$0xff]
        %v447 = vunpack.c.l.b16 %v351
        %v448 = vunpack.c.h.b16 %v351
        %v449 = vunpack.c.l.b16 %v352
        %v450 = vunpack.c.h.b16 %v352
        %v451 = vunpack.c.l.b16 %v353
        %v452 = vunpack.c.h.b16 %v353
        %v453 = vunpack.c.l.b16 %v354
        %v454 = vunpack.c.h.b16 %v354
        %v455 = vunpack.c.l.b16 %v355
        %v456 = vunpack.c.h.b16 %v355
        %v457 = vunpack.c.l.b16 %v356
        %v458 = vunpack.c.h.b16 %v356
        %v459 = vunpack.c.l.b16 %v357
        %v460 = vunpack.c.h.b16 %v357
        %v461 = vunpack.c.l.b16 %v358
        %v462 = vunpack.c.h.b16 %v358
        %v463 = vunpack.c.l.b16 %v359
        %v464 = vunpack.c.h.b16 %v359
        %v465 = vunpack.c.l.b16 %v360
        %v466 = vunpack.c.h.b16 %v360
        %v467 = vunpack.c.l.b16 %v361
        %v468 = vunpack.c.h.b16 %v361
        %v469 = vunpack.c.l.b16 %v362
        %v470 = vunpack.c.h.b16 %v362
        %v471 = vunpack.c.l.b16 %v363
        %v472 = vunpack.c.h.b16 %v363
        %v473 = vunpack.c.l.b16 %v364
        %v474 = vunpack.c.h.b16 %v364
        %v475 = vunpack.c.l.b16 %v365
        %v476 = vunpack.c.h.b16 %v365
        %v477 = vunpack.c.l.b16 %v366
        %v478 = vunpack.c.h.b16 %v366
        %v479 = vunpack.c.l.b16 %v367
        %v480 = vunpack.c.h.b16 %v367
        %v481 = vunpack.c.l.b16 %v368
        %v482 = vunpack.c.h.b16 %v368
        %v483 = vunpack.c.l.b16 %v369
        %v484 = vunpack.c.h.b16 %v369
        %v485 = vunpack.c.l.b16 %v370
        %v486 = vunpack.c.h.b16 %v370
        %v487 = vunpack.c.l.b16 %v371
        %v488 = vunpack.c.h.b16 %v371
        %v489 = vunpack.c.l.b16 %v372
        %v490 = vunpack.c.h.b16 %v372
        %v491 = vunpack.c.l.b16 %v373
        %v492 = vunpack.c.h.b16 %v373
        %v493 = vunpack.c.l.b16 %v374
        %v494 = vunpack.c.h.b16 %v374
        %v495 = vunpack.c.l.b16 %v375
        %v496 = vunpack.c.h.b16 %v375
        %v497 = vunpack.c.l.b16 %v376
        %v498 = vunpack.c.h.b16 %v376
        %v499 = vunpack.c.l.b16 %v377
        %v500 = vunpack.c.h.b16 %v377
        %v501 = vunpack.c.l.b16 %v378
        %v502 = vunpack.c.h.b16 %v378
        %v503 = vunpack.c.l.b16 %v379
        %v504 = vunpack.c.h.b16 %v379
        %v505 = vunpack.c.l.b16 %v380
        %v506 = vunpack.c.h.b16 %v380
        %v507 = vunpack.c.l.b16 %v381
        %v508 = vunpack.c.h.b16 %v381
        %v509 = vunpack.c.l.b16 %v382
        %v510 = vunpack.c.h.b16 %v382
        %v511 = vunpack.c.l.b16 %v383
        %v512 = vunpack.c.h.b16 %v383
        %v513 = vunpack.c.l.b16 %v384
        %v514 = vunpack.c.h.b16 %v384
        %v515 = vunpack.c.l.b16 %v385
        %v516 = vunpack.c.h.b16 %v385
        %v517 = vunpack.c.l.b16 %v386
        %v518 = vunpack.c.h.b16 %v386
        %v519 = vunpack.c.l.b16 %v387
        %v520 = vunpack.c.h.b16 %v387
        %v521 = vunpack.c.l.b16 %v388
        %v522 = vunpack.c.h.b16 %v388
        %v523 = vunpack.c.l.b16 %v389
        %v524 = vunpack.c.h.b16 %v389
        %v525 = vunpack.c.l.b16 %v390
        %v526 = vunpack.c.h.b16 %v390
        %v527 = vunpack.c.l.b16 %v391
        %v528 = vunpack.c.h.b16 %v391
        %v529 = vunpack.c.l.b16 %v392
        %v530 = vunpack.c.h.b16 %v392
        %v531 = vunpack.c.l.b16 %v393
        %v532 = vunpack.c.h.b16 %v393
        %v533 = vunpack.c.l.b16 %v394
        %v534 = vunpack.c.h.b16 %v394
        %v535 = vunpack.c.l.b16 %v395
        %v536 = vunpack.c.h.b16 %v395
        %v537 = vunpack.c.l.b16 %v396
        %v538 = vunpack.c.h.b16 %v396
        %v539 = vunpack.c.l.b16 %v397
        %v540 = vunpack.c.h.b16 %v397
        %v541 = vunpack.c.l.b16 %v398
        %v542 = vunpack.c.h.b16 %v398
        %v543 = vpack.c.b16 %v453, %v447
        %v544 = vpack.c.b16 %v454, %v448
        %v545 = vpack.c.b16 %v455, %v449
        %v546 = vpack.c.b16 %v456, %v450
        %v547 = vpack.c.b16 %v457, %v451
        %v548 = vpack.c.b16 %v458, %v452
        %v549 = vpack.c.b16 %v465, %v459
        %v550 = vpack.c.b16 %v466, %v460
        %v551 = vpack.c.b16 %v467, %v461
        %v552 = vpack.c.b16 %v468, %v462
        %v553 = vpack.c.b16 %v469, %v463
        %v554 = vpack.c.b16 %v470, %v464
        %v555 = vpack.c.b16 %v477, %v471
        %v556 = vpack.c.b16 %v478, %v472
        %v557 = vpack.c.b16 %v479, %v473
        %v558 = vpack.c.b16 %v480, %v474
        %v559 = vpack.c.b16 %v481, %v475
        %v560 = vpack.c.b16 %v482, %v476
        %v561 = vpack.c.b16 %v489, %v483
        %v562 = vpack.c.b16 %v490, %v484
        %v563 = vpack.c.b16 %v491, %v485
        %v564 = vpack.c.b16 %v492, %v486
        %v565 = vpack.c.b16 %v493, %v487
        %v566 = vpack.c.b16 %v494, %v488
        %v567 = vpack.c.b16 %v501, %v495
        %v568 = vpack.c.b16 %v502, %v496
        %v569 = vpack.c.b16 %v503, %v497
        %v570 = vpack.c.b16 %v504, %v498
        %v571 = vpack.c.b16 %v505, %v499
        %v572 = vpack.c.b16 %v506, %v500
        %v573 = vpack.c.b16 %v513, %v507
        %v574 = vpack.c.b16 %v514, %v508
        %v575 = vpack.c.b16 %v515, %v509
        %v576 = vpack.c.b16 %v516, %v510
        %v577 = vpack.c.b16 %v517, %v511
        %v578 = vpack.c.b16 %v518, %v512
        %v579 = vpack.c.b16 %v525, %v519
        %v580 = vpack.c.b16 %v526, %v520
        %v581 = vpack.c.b16 %v527, %v521
        %v582 = vpack.c.b16 %v528, %v522
        %v583 = vpack.c.b16 %v529, %v523
        %v584 = vpack.c.b16 %v530, %v524
        %v585 = vpack.c.b16 %v537, %v531
        %v586 = vpack.c.b16 %v538, %v532
        %v587 = vpack.c.b16 %v539, %v533
        %v588 = vpack.c.b16 %v540, %v534
        %v589 = vpack.c.b16 %v541, %v535
        %v590 = vpack.c.b16 %v542, %v536
        %639 = vmatprep.subr.bf16.mxu0 %v544
        %640 = vmatpush1.bf16.msra.mxu0 %v543
        %641 = vmatprep.subr.bf16.mxu0 %v550
        %642 = vmatpush1.bf16.msra.mxu0 %v549
        %643 = vmatprep.subr.bf16.mxu0 %v556
        %644 = vmatpush1.bf16.msra.mxu0 %v555
        %645 = vmatprep.subr.bf16.mxu0 %v562
        %646 = vmatpush1.bf16.msra.mxu0 %v561
        %647 = vmatprep.subr.bf16.mxu0 %v568
        %648 = vmatpush1.bf16.msra.mxu0 %v567
        %649 = vmatprep.subr.bf16.mxu0 %v574
        %650 = vmatpush1.bf16.msra.mxu0 %v573
        %651 = vmatprep.subr.bf16.mxu0 %v580
        %652 = vmatpush1.bf16.msra.mxu0 %v579
        %653 = vmatprep.subr.bf16.mxu0 %v586
        %654 = vmatpush1.bf16.msra.mxu0 %v585
        %655 = vmatprep.subr.bf16.mxu0 0
        %656 = vmatpush1.bf16.msra.mxu0 0
        %657 = vmatprep.subr.bf16.mxu0 0
        %658 = vmatpush1.bf16.msra.mxu0 0
        %659 = vmatprep.subr.bf16.mxu0 0
        %660 = vmatpush1.bf16.msra.mxu0 0
        %661 = vmatprep.subr.bf16.mxu0 0
        %662 = vmatpush1.bf16.msra.mxu0 0
        %663 = vmatprep.subr.bf16.mxu0 0
        %664 = vmatpush1.bf16.msra.mxu0 0
        %665 = vmatprep.subr.bf16.mxu0 0
        %666 = vmatpush1.bf16.msra.mxu0 0
        %667 = vmatprep.subr.bf16.mxu0 0
        %668 = vmatpush1.bf16.msra.mxu0 0
        %669 = vmatprep.subr.bf16.mxu0 0
        %670 = vmatpush1.bf16.msra.mxu0 0
        %671 = vmatprep.mubr.bf16.mxu0 0
        %672 = vmatmul.mubr.bf16.gmra.mrb[0].mxu0 %v350
        %v673 = vpop.f32.mrb[0].mxu0
        %v674 = vadd.f32 0.0, %v673
        %v675 = vpop.f32.mrb[0].mxu0
        %v676 = vadd.f32 0.0, %v675
        %v677 = vpop.f32.mrb[0].mxu0
        %v678 = vadd.f32 0.0, %v677
        %v679 = vpop.f32.mrb[0].mxu0
        %v680 = vadd.f32 0.0, %v679
        %681 = vdwg.mxu0
        %682 = vmatprep.subr.bf16.mxu0 %v546
        %683 = vmatpush1.bf16.msra.mxu0 %v545
        %684 = vmatprep.subr.bf16.mxu0 %v552
        %685 = vmatpush1.bf16.msra.mxu0 %v551
        %686 = vmatprep.subr.bf16.mxu0 %v558
        %687 = vmatpush1.bf16.msra.mxu0 %v557
        %688 = vmatprep.subr.bf16.mxu0 %v564
        %689 = vmatpush1.bf16.msra.mxu0 %v563
        %690 = vmatprep.subr.bf16.mxu0 %v570
        %691 = vmatpush1.bf16.msra.mxu0 %v569
        %692 = vmatprep.subr.bf16.mxu0 %v576
        %693 = vmatpush1.bf16.msra.mxu0 %v575
        %694 = vmatprep.subr.bf16.mxu0 %v582
        %695 = vmatpush1.bf16.msra.mxu0 %v581
        %696 = vmatprep.subr.bf16.mxu0 %v588
        %697 = vmatpush1.bf16.msra.mxu0 %v587
        %698 = vmatprep.subr.bf16.mxu0 0
        %699 = vmatpush1.bf16.msra.mxu0 0
        %700 = vmatprep.subr.bf16.mxu0 0
        %701 = vmatpush1.bf16.msra.mxu0 0
        %702 = vmatprep.subr.bf16.mxu0 0
        %703 = vmatpush1.bf16.msra.mxu0 0
        %704 = vmatprep.subr.bf16.mxu0 0
        %705 = vmatpush1.bf16.msra.mxu0 0
        %706 = vmatprep.subr.bf16.mxu0 0
        %707 = vmatpush1.bf16.msra.mxu0 0
        %708 = vmatprep.subr.bf16.mxu0 0
        %709 = vmatpush1.bf16.msra.mxu0 0
        %710 = vmatprep.subr.bf16.mxu0 0
        %711 = vmatpush1.bf16.msra.mxu0 0
        %712 = vmatprep.subr.bf16.mxu0 0
        %713 = vmatpush1.bf16.msra.mxu0 0
        %714 = vmatprep.mubr.bf16.mxu0 0
        %715 = vmatmul.mubr.bf16.gmra.mrb[0].mxu0 %v350
        %v716 = vpop.f32.mrb[0].mxu0
        %v717 = vadd.f32 0.0, %v716
        %v718 = vpop.f32.mrb[0].mxu0
        %v719 = vadd.f32 0.0, %v718
        %v720 = vpop.f32.mrb[0].mxu0
        %v721 = vadd.f32 0.0, %v720
        %v722 = vpop.f32.mrb[0].mxu0
        %v723 = vadd.f32 0.0, %v722
        %724 = vdwg.mxu0
        %725 = vmatprep.subr.bf16.mxu0 %v548
        %726 = vmatpush1.bf16.msra.mxu0 %v547
        %727 = vmatprep.subr.bf16.mxu0 %v554
        %728 = vmatpush1.bf16.msra.mxu0 %v553
        %729 = vmatprep.subr.bf16.mxu0 %v560
        %730 = vmatpush1.bf16.msra.mxu0 %v559
        %731 = vmatprep.subr.bf16.mxu0 %v566
        %732 = vmatpush1.bf16.msra.mxu0 %v565
        %733 = vmatprep.subr.bf16.mxu0 %v572
        %734 = vmatpush1.bf16.msra.mxu0 %v571
        %735 = vmatprep.subr.bf16.mxu0 %v578
        %736 = vmatpush1.bf16.msra.mxu0 %v577
        %737 = vmatprep.subr.bf16.mxu0 %v584
        %738 = vmatpush1.bf16.msra.mxu0 %v583
        %739 = vmatprep.subr.bf16.mxu0 %v590
        %740 = vmatpush1.bf16.msra.mxu0 %v589
        %741 = vmatprep.subr.bf16.mxu0 0
        %742 = vmatpush1.bf16.msra.mxu0 0
        %743 = vmatprep.subr.bf16.mxu0 0
        %744 = vmatpush1.bf16.msra.mxu0 0
        %745 = vmatprep.subr.bf16.mxu0 0
        %746 = vmatpush1.bf16.msra.mxu0 0
        %747 = vmatprep.subr.bf16.mxu0 0
        %748 = vmatpush1.bf16.msra.mxu0 0
        %749 = vmatprep.subr.bf16.mxu0 0
        %750 = vmatpush1.bf16.msra.mxu0 0
        %751 = vmatprep.subr.bf16.mxu0 0
        %752 = vmatpush1.bf16.msra.mxu0 0
        %753 = vmatprep.subr.bf16.mxu0 0
        %754 = vmatpush1.bf16.msra.mxu0 0
        %755 = vmatprep.subr.bf16.mxu0 0
        %756 = vmatpush1.bf16.msra.mxu0 0
        %757 = vmatprep.mubr.bf16.mxu0 0
        %758 = vmatmul.mubr.bf16.gmra.mrb[0].mxu0 %v350
        %v759 = vpop.f32.mrb[0].mxu0
        %v760 = vadd.f32 0.0, %v759
        %v761 = vpop.f32.mrb[0].mxu0
        %v762 = vadd.f32 0.0, %v761
        %v763 = vpop.f32.mrb[0].mxu0
        %v764 = vadd.f32 0.0, %v763
        %v765 = vpop.f32.mrb[0].mxu0
        %v766 = vadd.f32 0.0, %v765
        %767 = vdwg.mxu0
        %v768 = vlaneseq
        %v769 = vshrl.u32 %v768, 7
        %v770 = vadd.s32 %v769, 8
        %vm771 = vcmp.le.s32.totalorder %v336, %v769
        %vm772 = vcmp.le.s32.totalorder %v336, %v770
        %773 = vrot.lane.b32.xlu0 %v674, 127
        %v774 = vpop.permute.xlu0 %773
        %775 = vrot.lane.b32.xlu0 %v678, 127
        %v776 = vpop.permute.xlu0 %775
        %777 = vrot.lane.b32.xlu0 %v674, 1
        %v778 = vpop.permute.xlu0 %777
        %779 = vrot.lane.b32.xlu0 %v678, 1
        %v780 = vpop.permute.xlu0 %779
        %v781 = vsel %vm349, %v774, %v778
        %v782 = vsel %vm349, %v776, %v780
        %v783 = vmul.f32 %v674, %v331
        %v784 = vmul.f32 %v678, %v332
        %v785 = vmul.f32 %v781, %v333
        %v786 = vmul.f32 %v782, %v334
        %v787 = vadd.f32 %v783, %v785
        %v788 = vadd.f32 %v784, %v786
        %v789 = vpack.c.bf16 %v788, %v787
        %790 = vrot.lane.b32.xlu0 %v676, 127
        %v791 = vpop.permute.xlu0 %790
        %792 = vrot.lane.b32.xlu0 %v680, 127
        %v793 = vpop.permute.xlu0 %792
        %794 = vrot.lane.b32.xlu0 %v676, 1
        %v795 = vpop.permute.xlu0 %794
        %796 = vrot.lane.b32.xlu0 %v680, 1
        %v797 = vpop.permute.xlu0 %796
        %v798 = vsel %vm349, %v791, %v795
        %v799 = vsel %vm349, %v793, %v797
        %v800 = vmul.f32 %v676, %v331
        %v801 = vmul.f32 %v680, %v332
        %v802 = vmul.f32 %v798, %v333
        %v803 = vmul.f32 %v799, %v334
        %v804 = vadd.f32 %v800, %v802
        %v805 = vadd.f32 %v801, %v803
        %v806 = vpack.c.bf16 %v805, %v804
        %807 = vmatprep.subr.bf16.mxu0 0
        %808 = vmatpush1.bf16.xpose.msra.mxu0 %v806
        %809 = vmatprep.subr.bf16.mxu0 0
        %810 = vmatpush1.bf16.xpose.msra.mxu0 0
        %811 = vmatprep.subr.bf16.mxu0 0
        %812 = vmatpush1.bf16.xpose.msra.mxu0 0
        %813 = vmatprep.subr.bf16.mxu0 0
        %814 = vmatpush1.bf16.xpose.msra.mxu0 0
        %815 = vmatprep.subr.bf16.mxu0 0
        %816 = vmatpush1.bf16.xpose.msra.mxu0 0
        %817 = vmatprep.subr.bf16.mxu0 0
        %818 = vmatpush1.bf16.xpose.msra.mxu0 0
        %819 = vmatprep.subr.bf16.mxu0 0
        %820 = vmatpush1.bf16.xpose.msra.mxu0 0
        %821 = vmatprep.subr.bf16.mxu0 0
        %822 = vmatpush1.bf16.xpose.msra.mxu0 0
        %823 = vmatprep.subr.bf16.mxu0 0
        %824 = vmatpush1.bf16.xpose.msra.mxu0 0
        %825 = vmatprep.subr.bf16.mxu0 0
        %826 = vmatpush1.bf16.xpose.msra.mxu0 0
        %827 = vmatprep.subr.bf16.mxu0 0
        %828 = vmatpush1.bf16.xpose.msra.mxu0 0
        %829 = vmatprep.subr.bf16.mxu0 0
        %830 = vmatpush1.bf16.xpose.msra.mxu0 0
        %831 = vmatprep.subr.bf16.mxu0 0
        %832 = vmatpush1.bf16.xpose.msra.mxu0 0
        %833 = vmatprep.subr.bf16.mxu0 0
        %834 = vmatpush1.bf16.xpose.msra.mxu0 0
        %835 = vmatprep.subr.bf16.mxu0 0
        %836 = vmatpush1.bf16.xpose.msra.mxu0 0
        %837 = vmatprep.subr.bf16.mxu0 0
        %838 = vmatpush1.bf16.xpose.msra.mxu0 0
        %839 = vmatprep.mubr.bf16.mxu0 0
        %840 = vmatmul.mubr.bf16.gmra.mrb[0].mxu0 %v789
        %v841 = vpop.f32.mrb[0].mxu0
        %v842 = vadd.f32 0.0, %v841
        %v843 = vpop.f32.mrb[0].mxu0
        %v844 = vpop.f32.mrb[0].mxu0
        %v845 = vadd.f32 0.0, %v844
        %v846 = vpop.f32.mrb[0].mxu0
        %847 = vdwg.mxu0
        %v848 = vmul.f32 %v842, 0.088388346
        %v849 = vmul.f32 %v845, 0.088388346
        %v850 = vsel %vm771, %v848, -1e+30
        %v851 = vsel %vm772, %v849, -1e+30
        %vm852 = vcmask 130048
        %v853 = vsel %vm852, %v850, -inf
        %854 = vmax.xlane.f32.xlu0 %v853
        %v855 = vpop.xlane.xlu0 %854
        %v856 = vsel %vm852, %v851, -inf
        %857 = vmax.xlane.f32.xlu0 %v856
        %v858 = vpop.xlane.xlu0 %857
        %v859 = vsub.f32 %v850, %v855
        %v860 = vsub.f32 %v851, %v858
        %v861 = vmul.f32 %v859, 1.442695
        %v862 = vpow.pop %v861
        %v863 = vmul.f32 %v860, 1.442695
        %v864 = vpow.pop %v863
        %v865 = vsel %vm852, %v862, 0.0
        %866 = vadd.xlane.f32.xlu0 %v865
        %v867 = vpop.xlane.xlu0 %866
        %v868 = vsel %vm852, %v864, 0.0
        %869 = vadd.xlane.f32.xlu0 %v868
        %v870 = vpop.xlane.xlu0 %869
        %v871 = vpack.c.bf16 %v864, %v862
        %v872 = vpack.c.bf16 %v721, %v717
        %v874 = vsel %vm852, %v871, 0
        %876 = vmatprep.subr.bf16.mxu0 0
        %877 = vmatpush1.bf16.msra.mxu0 %v872
        %878 = vmatprep.subr.bf16.mxu0 0
        %879 = vmatpush1.bf16.msra.mxu0 0
        %880 = vmatprep.subr.bf16.mxu0 0
        %881 = vmatpush1.bf16.msra.mxu0 0
        %882 = vmatprep.subr.bf16.mxu0 0
        %883 = vmatpush1.bf16.msra.mxu0 0
        %884 = vmatprep.subr.bf16.mxu0 0
        %885 = vmatpush1.bf16.msra.mxu0 0
        %886 = vmatprep.subr.bf16.mxu0 0
        %887 = vmatpush1.bf16.msra.mxu0 0
        %888 = vmatprep.subr.bf16.mxu0 0
        %889 = vmatpush1.bf16.msra.mxu0 0
        %890 = vmatprep.subr.bf16.mxu0 0
        %891 = vmatpush1.bf16.msra.mxu0 0
        %892 = vmatprep.subr.bf16.mxu0 0
        %893 = vmatpush1.bf16.msra.mxu0 0
        %894 = vmatprep.subr.bf16.mxu0 0
        %895 = vmatpush1.bf16.msra.mxu0 0
        %896 = vmatprep.subr.bf16.mxu0 0
        %897 = vmatpush1.bf16.msra.mxu0 0
        %898 = vmatprep.subr.bf16.mxu0 0
        %899 = vmatpush1.bf16.msra.mxu0 0
        %900 = vmatprep.subr.bf16.mxu0 0
        %901 = vmatpush1.bf16.msra.mxu0 0
        %902 = vmatprep.subr.bf16.mxu0 0
        %903 = vmatpush1.bf16.msra.mxu0 0
        %904 = vmatprep.subr.bf16.mxu0 0
        %905 = vmatpush1.bf16.msra.mxu0 0
        %906 = vmatprep.subr.bf16.mxu0 0
        %907 = vmatpush1.bf16.msra.mxu0 0
        %908 = vmatprep.mubr.bf16.mxu0 0
        %909 = vmatmul.mubr.bf16.gmra.mrb[0].mxu0 %v874
        %v910 = vpop.f32.mrb[0].mxu0
        %v911 = vadd.f32 0.0, %v910
        %v912 = vpop.f32.mrb[0].mxu0
        %v913 = vpop.f32.mrb[0].mxu0
        %v914 = vadd.f32 0.0, %v913
        %v915 = vpop.f32.mrb[0].mxu0
        %916 = vdwg.mxu0
        %v917 = vrcp.pop %v867
        %v918 = vrcp.pop %v870
        %v919 = vmul.f32 %v911, %v917
        %v920 = vmul.f32 %v914, %v918
        %921 = vrot.lane.b32.xlu0 %v719, 127
        %v922 = vpop.permute.xlu0 %921
        %923 = vrot.lane.b32.xlu0 %v723, 127
        %v924 = vpop.permute.xlu0 %923
        %925 = vrot.lane.b32.xlu0 %v719, 1
        %v926 = vpop.permute.xlu0 %925
        %927 = vrot.lane.b32.xlu0 %v723, 1
        %v928 = vpop.permute.xlu0 %927
        %v929 = vsel %vm349, %v922, %v926
        %v930 = vsel %vm349, %v924, %v928
        %v931 = vmul.f32 %v719, %v331
        %v932 = vmul.f32 %v723, %v332
        %v933 = vmul.f32 %v929, %v333
        %v934 = vmul.f32 %v930, %v334
        %v935 = vadd.f32 %v931, %v933
        %v936 = vadd.f32 %v932, %v934
        %v937 = vpack.c.bf16 %v936, %v935
        %938 = vrot.lane.b32.xlu0 %v760, 127
        %v939 = vpop.permute.xlu0 %938
        %940 = vrot.lane.b32.xlu0 %v764, 127
        %v941 = vpop.permute.xlu0 %940
        %942 = vrot.lane.b32.xlu0 %v760, 1
        %v943 = vpop.permute.xlu0 %942
        %944 = vrot.lane.b32.xlu0 %v764, 1
        %v945 = vpop.permute.xlu0 %944
        %v946 = vsel %vm349, %v939, %v943
        %v947 = vsel %vm349, %v941, %v945
        %v948 = vmul.f32 %v760, %v331
        %v949 = vmul.f32 %v764, %v332
        %v950 = vmul.f32 %v946, %v333
        %v951 = vmul.f32 %v947, %v334
        %v952 = vadd.f32 %v948, %v950
        %v953 = vadd.f32 %v949, %v951
        %v954 = vpack.c.bf16 %v953, %v952
        %955 = vmatprep.subr.bf16.mxu0 0
        %956 = vmatpush1.bf16.xpose.msra.mxu0 %v954
        %957 = vmatprep.subr.bf16.mxu0 0
        %958 = vmatpush1.bf16.xpose.msra.mxu0 0
        %959 = vmatprep.subr.bf16.mxu0 0
        %960 = vmatpush1.bf16.xpose.msra.mxu0 0
        %961 = vmatprep.subr.bf16.mxu0 0
        %962 = vmatpush1.bf16.xpose.msra.mxu0 0
        %963 = vmatprep.subr.bf16.mxu0 0
        %964 = vmatpush1.bf16.xpose.msra.mxu0 0
        %965 = vmatprep.subr.bf16.mxu0 0
        %966 = vmatpush1.bf16.xpose.msra.mxu0 0
        %967 = vmatprep.subr.bf16.mxu0 0
        %968 = vmatpush1.bf16.xpose.msra.mxu0 0
        %969 = vmatprep.subr.bf16.mxu0 0
        %970 = vmatpush1.bf16.xpose.msra.mxu0 0
        %971 = vmatprep.subr.bf16.mxu0 0
        %972 = vmatpush1.bf16.xpose.msra.mxu0 0
        %973 = vmatprep.subr.bf16.mxu0 0
        %974 = vmatpush1.bf16.xpose.msra.mxu0 0
        %975 = vmatprep.subr.bf16.mxu0 0
        %976 = vmatpush1.bf16.xpose.msra.mxu0 0
        %977 = vmatprep.subr.bf16.mxu0 0
        %978 = vmatpush1.bf16.xpose.msra.mxu0 0
        %979 = vmatprep.subr.bf16.mxu0 0
        %980 = vmatpush1.bf16.xpose.msra.mxu0 0
        %981 = vmatprep.subr.bf16.mxu0 0
        %982 = vmatpush1.bf16.xpose.msra.mxu0 0
        %983 = vmatprep.subr.bf16.mxu0 0
        %984 = vmatpush1.bf16.xpose.msra.mxu0 0
        %985 = vmatprep.subr.bf16.mxu0 0
        %986 = vmatpush1.bf16.xpose.msra.mxu0 0
        %987 = vmatprep.mubr.bf16.mxu0 0
        %988 = vmatmul.mubr.bf16.gmra.mrb[0].mxu0 %v937
        %v989 = vpop.f32.mrb[0].mxu0
        %v990 = vadd.f32 0.0, %v989
        %v991 = vpop.f32.mrb[0].mxu0
        %v992 = vpop.f32.mrb[0].mxu0
        %v993 = vadd.f32 0.0, %v992
        %v994 = vpop.f32.mrb[0].mxu0
        %995 = vdwg.mxu0
        %v996 = vmul.f32 %v990, 0.088388346
        %v997 = vmul.f32 %v993, 0.088388346
        %v998 = vsel %vm771, %v996, -1e+30
        %v999 = vsel %vm772, %v997, -1e+30
        %v1000 = vsel %vm852, %v998, -inf
        %1001 = vmax.xlane.f32.xlu0 %v1000
        %v1002 = vpop.xlane.xlu0 %1001
        %v1003 = vsel %vm852, %v999, -inf
        %1004 = vmax.xlane.f32.xlu0 %v1003
        %v1005 = vpop.xlane.xlu0 %1004
        %v1006 = vsub.f32 %v998, %v1002
        %v1007 = vsub.f32 %v999, %v1005
        %v1008 = vmul.f32 %v1006, 1.442695
        %v1009 = vpow.pop %v1008
        %v1010 = vmul.f32 %v1007, 1.442695
        %v1011 = vpow.pop %v1010
        %v1012 = vsel %vm852, %v1009, 0.0
        %1013 = vadd.xlane.f32.xlu0 %v1012
        %v1014 = vpop.xlane.xlu0 %1013
        %v1015 = vsel %vm852, %v1011, 0.0
        %1016 = vadd.xlane.f32.xlu0 %v1015
        %v1017 = vpop.xlane.xlu0 %1016
        %v1018 = vpack.c.bf16 %v1011, %v1009
        %v1019 = vpack.c.bf16 %v766, %v762
        %v1021 = vsel %vm852, %v1018, 0
        %1023 = vmatprep.subr.bf16.mxu0 0
        %1024 = vmatpush1.bf16.msra.mxu0 %v1019
        %1025 = vmatprep.subr.bf16.mxu0 0
        %1026 = vmatpush1.bf16.msra.mxu0 0
        %1027 = vmatprep.subr.bf16.mxu0 0
        %1028 = vmatpush1.bf16.msra.mxu0 0
        %1029 = vmatprep.subr.bf16.mxu0 0
        %1030 = vmatpush1.bf16.msra.mxu0 0
        %1031 = vmatprep.subr.bf16.mxu0 0
        %1032 = vmatpush1.bf16.msra.mxu0 0
        %1033 = vmatprep.subr.bf16.mxu0 0
        %1034 = vmatpush1.bf16.msra.mxu0 0
        %1035 = vmatprep.subr.bf16.mxu0 0
        %1036 = vmatpush1.bf16.msra.mxu0 0
        %1037 = vmatprep.subr.bf16.mxu0 0
        %1038 = vmatpush1.bf16.msra.mxu0 0
        %1039 = vmatprep.subr.bf16.mxu0 0
        %1040 = vmatpush1.bf16.msra.mxu0 0
        %1041 = vmatprep.subr.bf16.mxu0 0
        %1042 = vmatpush1.bf16.msra.mxu0 0
        %1043 = vmatprep.subr.bf16.mxu0 0
        %1044 = vmatpush1.bf16.msra.mxu0 0
        %1045 = vmatprep.subr.bf16.mxu0 0
        %1046 = vmatpush1.bf16.msra.mxu0 0
        %1047 = vmatprep.subr.bf16.mxu0 0
        %1048 = vmatpush1.bf16.msra.mxu0 0
        %1049 = vmatprep.subr.bf16.mxu0 0
        %1050 = vmatpush1.bf16.msra.mxu0 0
        %1051 = vmatprep.subr.bf16.mxu0 0
        %1052 = vmatpush1.bf16.msra.mxu0 0
        %1053 = vmatprep.subr.bf16.mxu0 0
        %1054 = vmatpush1.bf16.msra.mxu0 0
        %1055 = vmatprep.mubr.bf16.mxu0 0
        %1056 = vmatmul.mubr.bf16.gmra.mrb[0].mxu0 %v1021
        %v1057 = vpop.f32.mrb[0].mxu0
        %v1058 = vadd.f32 0.0, %v1057
        %v1059 = vpop.f32.mrb[0].mxu0
        %v1060 = vpop.f32.mrb[0].mxu0
        %v1061 = vadd.f32 0.0, %v1060
        %v1062 = vpop.f32.mrb[0].mxu0
        %1063 = vdwg.mxu0
        %v1064 = vrcp.pop %v1014
        %v1065 = vrcp.pop %v1017
        %v1066 = vmul.f32 %v1058, %v1064
        %v1067 = vmul.f32 %v1061, %v1065
        %v1068 = vpack.c.bf16 %v920, %v919
        %v1069 = vpack.c.bf16 %v1067, %v1066
        %v1070 = vld [vmem:[%s3] sm:$0xf]
        %v1071 = vld [vmem:[%s3 + $0x4] sm:$0xf]
        %v1072 = vld [vmem:[%s3 + $0x8] sm:$0xf]
        %v1073 = vld [vmem:[%s3 + $0xc] sm:$0xf]
        %v1074 = vld [vmem:[%s3 + $0x10] sm:$0xf]
        %v1075 = vld [vmem:[%s3 + $0x14] sm:$0xf]
        %v1076 = vld [vmem:[%s3 + $0x18] sm:$0xf]
        %v1077 = vld [vmem:[%s3 + $0x1c] sm:$0xf]
        %v1078 = vld [vmem:[%s3 + $0x20] sm:$0xf]
        %v1079 = vld [vmem:[%s3 + $0x24] sm:$0xf]
        %v1080 = vld [vmem:[%s3 + $0x28] sm:$0xf]
        %v1081 = vld [vmem:[%s3 + $0x2c] sm:$0xf]
        %v1082 = vld [vmem:[%s3 + $0x30] sm:$0xf]
        %v1083 = vld [vmem:[%s3 + $0x34] sm:$0xf]
        %v1084 = vld [vmem:[%s3 + $0x38] sm:$0xf]
        %v1085 = vld [vmem:[%s3 + $0x3c] sm:$0xf]
        %v1086 = vld [vmem:[%s3 + $0x40] sm:$0xf]
        %v1087 = vld [vmem:[%s3 + $0x44] sm:$0xf]
        %v1088 = vld [vmem:[%s3 + $0x48] sm:$0xf]
        %v1089 = vld [vmem:[%s3 + $0x4c] sm:$0xf]
        %v1090 = vld [vmem:[%s3 + $0x50] sm:$0xf]
        %v1091 = vld [vmem:[%s3 + $0x54] sm:$0xf]
        %v1092 = vld [vmem:[%s3 + $0x58] sm:$0xf]
        %v1093 = vld [vmem:[%s3 + $0x5c] sm:$0xf]
        %v1094 = vld [vmem:[%s3 + $0x60] sm:$0xf]
        %v1095 = vld [vmem:[%s3 + $0x64] sm:$0xf]
        %v1096 = vld [vmem:[%s3 + $0x68] sm:$0xf]
        %v1097 = vld [vmem:[%s3 + $0x6c] sm:$0xf]
        %v1098 = vld [vmem:[%s3 + $0x70] sm:$0xf]
        %v1099 = vld [vmem:[%s3 + $0x74] sm:$0xf]
        %v1100 = vld [vmem:[%s3 + $0x78] sm:$0xf]
        %v1101 = vld [vmem:[%s3 + $0x7c] sm:$0xf]
        %v1102 = vld [vmem:[%s4] sm:$0x1]
        %v1104 = vlaneseq
        %v1105 = vshrl.u32 %v1104, 7
        %v1106 = vsub.s32 0, %v1105
        %v1107 = vrot.slane %v1102, %v1106
        %v1141 = vunpack.c.l.b16 %v1070
        %v1142 = vunpack.c.l.b16 %v1071
        %v1143 = vunpack.c.l.b16 %v1072
        %v1144 = vunpack.c.l.b16 %v1073
        %v1145 = vunpack.c.l.b16 %v1074
        %v1146 = vunpack.c.l.b16 %v1075
        %v1147 = vunpack.c.l.b16 %v1076
        %v1148 = vunpack.c.l.b16 %v1077
        %v1149 = vunpack.c.l.b16 %v1078
        %v1150 = vunpack.c.l.b16 %v1079
        %v1151 = vunpack.c.l.b16 %v1080
        %v1152 = vunpack.c.l.b16 %v1081
        %v1153 = vunpack.c.l.b16 %v1082
        %v1154 = vunpack.c.l.b16 %v1083
        %v1155 = vunpack.c.l.b16 %v1084
        %v1156 = vunpack.c.l.b16 %v1085
        %v1157 = vunpack.c.l.b16 %v1086
        %v1158 = vunpack.c.l.b16 %v1087
        %v1159 = vunpack.c.l.b16 %v1088
        %v1160 = vunpack.c.l.b16 %v1089
        %v1161 = vunpack.c.l.b16 %v1090
        %v1162 = vunpack.c.l.b16 %v1091
        %v1163 = vunpack.c.l.b16 %v1092
        %v1164 = vunpack.c.l.b16 %v1093
        %v1165 = vunpack.c.l.b16 %v1094
        %v1166 = vunpack.c.l.b16 %v1095
        %v1167 = vunpack.c.l.b16 %v1096
        %v1168 = vunpack.c.l.b16 %v1097
        %v1169 = vunpack.c.l.b16 %v1098
        %v1170 = vunpack.c.l.b16 %v1099
        %v1171 = vunpack.c.l.b16 %v1100
        %v1172 = vunpack.c.l.b16 %v1101
        %v1173 = vpack.c.b16 %v1142, %v1141
        %v1174 = vpack.c.b16 %v1144, %v1143
        %v1175 = vpack.c.b16 %v1146, %v1145
        %v1176 = vpack.c.b16 %v1148, %v1147
        %v1177 = vpack.c.b16 %v1150, %v1149
        %v1178 = vpack.c.b16 %v1152, %v1151
        %v1179 = vpack.c.b16 %v1154, %v1153
        %v1180 = vpack.c.b16 %v1156, %v1155
        %v1181 = vpack.c.b16 %v1158, %v1157
        %v1182 = vpack.c.b16 %v1160, %v1159
        %v1183 = vpack.c.b16 %v1162, %v1161
        %v1184 = vpack.c.b16 %v1164, %v1163
        %v1185 = vpack.c.b16 %v1166, %v1165
        %v1186 = vpack.c.b16 %v1168, %v1167
        %v1187 = vpack.c.b16 %v1170, %v1169
        %v1188 = vpack.c.b16 %v1172, %v1171
        %1205 = vmatprep.subr.bf16.mxu0 0
        %1206 = vmatpush1.bf16.msra.mxu0 %v1173
        %1207 = vmatprep.subr.bf16.mxu0 0
        %1208 = vmatpush1.bf16.msra.mxu0 %v1174
        %1209 = vmatprep.subr.bf16.mxu0 0
        %1210 = vmatpush1.bf16.msra.mxu0 %v1175
        %1211 = vmatprep.subr.bf16.mxu0 0
        %1212 = vmatpush1.bf16.msra.mxu0 %v1176
        %1213 = vmatprep.subr.bf16.mxu0 0
        %1214 = vmatpush1.bf16.msra.mxu0 %v1177
        %1215 = vmatprep.subr.bf16.mxu0 0
        %1216 = vmatpush1.bf16.msra.mxu0 %v1178
        %1217 = vmatprep.subr.bf16.mxu0 0
        %1218 = vmatpush1.bf16.msra.mxu0 %v1179
        %1219 = vmatprep.subr.bf16.mxu0 0
        %1220 = vmatpush1.bf16.msra.mxu0 %v1180
        %1221 = vmatprep.subr.bf16.mxu0 0
        %1222 = vmatpush1.bf16.msra.mxu0 %v1181
        %1223 = vmatprep.subr.bf16.mxu0 0
        %1224 = vmatpush1.bf16.msra.mxu0 %v1182
        %1225 = vmatprep.subr.bf16.mxu0 0
        %1226 = vmatpush1.bf16.msra.mxu0 %v1183
        %1227 = vmatprep.subr.bf16.mxu0 0
        %1228 = vmatpush1.bf16.msra.mxu0 %v1184
        %1229 = vmatprep.subr.bf16.mxu0 0
        %1230 = vmatpush1.bf16.msra.mxu0 %v1185
        %1231 = vmatprep.subr.bf16.mxu0 0
        %1232 = vmatpush1.bf16.msra.mxu0 %v1186
        %1233 = vmatprep.subr.bf16.mxu0 0
        %1234 = vmatpush1.bf16.msra.mxu0 %v1187
        %1235 = vmatprep.subr.bf16.mxu0 0
        %1236 = vmatpush1.bf16.msra.mxu0 %v1188
        %1237 = vmatprep.mubr.bf16.mxu0 %v1069
        %1238 = vmatmul.mubr.bf16.gmra.mrb[0].mxu0 %v1068
        %v1239 = vpop.f32.mrb[0].mxu0
        %v1240 = vadd.f32 %v1107, %v1239
        %v1241 = vpop.f32.mrb[0].mxu0
        %v1242 = vpop.f32.mrb[0].mxu0
        %v1243 = vadd.f32 %v1107, %v1242
        %v1244 = vpop.f32.mrb[0].mxu0
        %1245 = vdwg.mxu0
        %v1246 = vadd.f32 %v329, %v1240
        %v1247 = vadd.f32 %v330, %v1243
        %1248 = vst [vmem:[%s293] sm:$0xff] %v1246
        %1249 = vst [vmem:[%s293 + $0x8] sm:$0xff] %v1247
        %p1250 = scmp.lt.s32.totalorder %s19, 1
        %s1251 = scalar_select %p1250, %s19, 1
        %s1252 = smul.addr %s1251, 2
        %s1253 = smul.addr %s1252, 8
        %s1254 = scalar_lea.vmem %s7, %s1253
        // Predicated region
        $region53: #{rope_model_forward.2} parent=47 // pred_check
          %p1255 = pneg %p189
        $region54: #{rope_model_forward.2} parent=47 // pred_check_branch
          %1257 = sbr.rel (%p1255) target = $region56
        $region55: #{rope_model_forward.2} parent=47 // pred_region
          _
        $region56: #{rope_model_forward.2} parent=47 // pred_fallthru
          _
      $region48: #{rope_model_forward.2} parent=5 // pred_fallthru
        _
      %p1258 = scmp.le.s32.totalorder 2, %s14
      // Predicated region
      $region57: #{rope_model_forward.2} parent=5 // pred_check
        %p1259 = pneg %p1258
      $region58: #{rope_model_forward.2} parent=5 // pred_check_branch
        %1261 = sbr.rel (%p1259) target = $region60
      $region59: #{rope_model_forward.2} parent=5 // pred_region
        %s1262 = ssub.s32 %s14, 2
        // Predicated region
        $region61: #{rope_model_forward.2} parent=59 // pred_check
          %p1263 = pneg %p195
        $region62: #{rope_model_forward.2} parent=59 // pred_check_branch
          %1265 = sbr.rel (%p1263) target = $region64
        $region63: #{rope_model_forward.2} parent=59 // pred_region
          %p1266 = scmp.lt.s32.totalorder %s20, 1
          %s1267 = scalar_select %p1266, %s20, 1
          %s1268 = smul.addr %s1267, 2
          %s1269 = smul.addr %s1268, 8
          %s1270 = scalar_lea.vmem %s7, %s1269
        $region64: #{rope_model_forward.2} parent=59 // pred_fallthru
          _
      $region60: #{rope_model_forward.2} parent=5 // pred_fallthru
        _
    $region6: #{rope_model_forward.2} parent=1 // loop_footer
      %s18 = sadd.s32 1, %s14
    $region7: #{rope_model_forward.2} parent=1 // loop_footer_branch
      %13 = sbr.rel target = $region3
    $region8: #{rope_model_forward.2} parent=1 // loop_exit
      _
    %1271 = vsyncpa [#allocation3], 1
    %s1272 = scalar_lea.sflag [#allocation3], 1
    %1273 = vsyncpa %s1272, 1

</llo_original>
